<compile_context>
chip_gen: v7x
topology: tpu7x:2x2x1
jax: 0.10.0
libtpu: 0.0.40
codegen_flags: <defaults>
</compile_context>

<pallas_src>
import functools

import jax
import jax.numpy as jnp
from jax.experimental import pallas as pl
from jax.experimental.pallas import tpu as pltpu


# ----------------------------------------------------------------------------- kernel
def fused_gcn_kernel(a_ref, xw0_ref, p_ref, w_ref, b_ref, wc_ref, bc_ref,
                     out_ref, xw_ref, pool_ref, *, tm, a_resident):
    """Fused 4-layer GCN + mean-pool + linear + sigmoid.

    Grid = (layer, node_row_block); layer axis outer (sequential), row blocks inner.
    xw_ref  : VMEM (2, N_pad, F_pad) bf16 ping-pong buffer holding XW_l = h_l @ W_l.
    pool_ref: VMEM (G_pad, F_pad) f32 mean-pool accumulator.
    """
    l = pl.program_id(0)                 # layer (sequential through xw_ref)
    i = pl.program_id(1)                 # node row block
    last_layer = pl.num_programs(0) - 1
    last_row = pl.num_programs(1) - 1
    row0 = pl.multiple_of(i * tm, tm)

    # Prologue (once): seed the XW ping-pong with the hoisted XW_0 = x @ W_0 (pure VMEM copy,
    # no matmul on the first step's critical path) and zero the pooling accumulator.
    @pl.when((l == 0) & (i == 0))
    def _init():
        xw_ref[0] = xw0_ref[...]
        pool_ref[...] = jnp.zeros_like(pool_ref)

    # Row block of this layer's output: relu(A[rows, :] @ XW_l + b_l)  (bf16 in, f32 MXU acc).
    # NOTE: padded node rows produce relu(b_l) != 0 here — intentional dead work; the zero A / P
    # columns for padded nodes keep the real rows and the pooled means exact. Do NOT "fix" the
    # padding to a nonzero bias.
    if a_resident:
        a_rows = a_ref[pl.ds(row0, tm), :]          # slice rows of the VMEM-resident adjacency
    else:
        a_rows = a_ref[...]                         # streamed (tm, n_pad) row panel
    acc = jnp.dot(a_rows, xw_ref[l % 2], preferred_element_type=jnp.float32)
    h_rows = jnp.maximum(acc + b_ref[l], 0.0)

    # Non-final layers: immediately fold W_{l+1} into the rows just produced (h_l is never
    # materialized in HBM and no extra full pass for XW_{l+1} is needed).
    @pl.when(l < last_layer)
    def _next_xw():
        l_next = jnp.minimum(l + 1, last_layer)     # clamp: branch is predicated, keep idx legal
        nxt = jnp.dot(h_rows.astype(xw_ref.dtype), w_ref[l_next],
                      preferred_element_type=jnp.float32)
        xw_ref[(l + 1) % 2, pl.ds(row0, tm), :] = nxt.astype(xw_ref.dtype)

    # Final layer: accumulate global mean-pool partial sums (P = scaled segment-sum matrix;
    # its index_map only advances on this layer, so earlier layers cost no P DMA).
    @pl.when(l == last_layer)
    def _pool():
        pool_ref[...] += jnp.dot(p_ref[...], h_rows,
                                 preferred_element_type=jnp.float32)

    # Epilogue (once): classifier + sigmoid, single lane-dense (G_pad, 128) store.
    @pl.when((l == last_layer) & (i == last_row))
    def _head():
        logits = jnp.dot(pool_ref[...], wc_ref[...],
                         preferred_element_type=jnp.float32) + bc_ref[...]
        out_ref[...] = jax.nn.sigmoid(logits)


def _vmem_budget_bytes():
    """Per-generation VMEM budget: physical capacity minus ~15% headroom for compiler scratch.
    Falls back to a conservative 64 MiB * 0.85 if the query is unavailable."""
    try:
        info = pltpu.get_tpu_info()
        cap = int(getattr(info, "vmem_capacity_bytes", 64 * 1024 * 1024))
    except Exception:
        cap = 64 * 1024 * 1024
    return int(cap * 0.85)


def fused_gcn_forward(a_hat, xw0, p, w_stack, b_stack, wc_pad, bc_pad, *,
                      block_rows, force_stream_a=False):
    n_pad = a_hat.shape[0]
    fp = xw0.shape[1]
    g_pad = p.shape[0]
    outp = wc_pad.shape[1]
    num_layers = w_stack.shape[0]
    last_layer = num_layers - 1
    tm = block_rows
    n_row_blocks = n_pad // tm

    budget = _vmem_budget_bytes()

    # VMEM accounting (counting Pallas' default 2x input double-buffering conservatively,
    # even for constant-index "resident" blocks).
    fixed_vmem = (2 * n_pad * fp * 2                  # XW_0 resident input (bf16)
                  + 2 * g_pad * tm * 4                # P column panels, double-buffered (f32)
                  + 2 * num_layers * fp * fp * 2      # layer weight stack (bf16)
                  + 2 * num_layers * fp * 4           # biases (f32)
                  + 2 * (fp * outp * 4 + outp * 4)    # classifier params
                  + 2 * n_pad * fp * 2                # XW ping-pong scratch (bf16)
                  + g_pad * fp * 4                    # pool accumulator
                  + 2 * g_pad * outp * 4)             # output block
    resident_a_vmem = 2 * n_pad * n_pad * 2           # resident A_hat (bf16)
    stream_a_vmem = 2 * tm * n_pad * 2                # streamed A_hat row panels (bf16)

    a_resident = (not force_stream_a) and (fixed_vmem + resident_a_vmem <= budget)
    vmem_needed = fixed_vmem + (resident_a_vmem if a_resident else stream_a_vmem)
    vmem_limit = int(min(max(2 * vmem_needed, 32 * 1024 * 1024), budget))

    # Advisory cost estimate (A is read once when resident, once per layer when streamed).
    a_bytes = n_pad * n_pad * 2 * (1 if a_resident else num_layers)
    flops = (num_layers * 2 * n_pad * n_pad * fp          # A @ XW per layer
             + (num_layers - 1) * 2 * n_pad * fp * fp     # W-folds (XW_0 hoisted to wrapper)
             + 2 * g_pad * n_pad * fp                     # pooling
             + 2 * g_pad * fp * outp)                     # classifier
    bytes_accessed = (a_bytes
                      + n_pad * fp * 2                    # XW_0 (bf16)
                      + g_pad * n_pad * 4                 # P (fetched ~once)
                      + num_layers * fp * fp * 2 + num_layers * fp * 4
                      + fp * outp * 4 + outp * 4 + g_pad * outp * 4)
    cost = pl.CostEstimate(flops=flops, transcendentals=g_pad * outp,
                           bytes_accessed=bytes_accessed)

    if a_resident:
        a_spec = pl.BlockSpec((n_pad, n_pad), lambda l, i: (0, 0))     # single DMA, then resident
    else:
        a_spec = pl.BlockSpec((tm, n_pad), lambda l, i: (i, 0))        # streamed row panels

    def p_index_map(l, i):
        # Only walk P's column blocks on the final layer; earlier layers keep the block index
        # constant so the Pallas pipeline re-uses the already-fetched buffer (no redundant DMA).
        return (0, jnp.where(l == last_layer, i, 0))

    kernel = functools.partial(fused_gcn_kernel, tm=tm, a_resident=a_resident)

    return pl.pallas_call(
        kernel,
        out_shape=jax.ShapeDtypeStruct((g_pad, outp), jnp.float32),
        grid_spec=pltpu.PrefetchScalarGridSpec(
            num_scalar_prefetch=0,
            grid=(num_layers, n_row_blocks),
            in_specs=[
                a_spec,                                                       # A_hat
                pl.BlockSpec((n_pad, fp), lambda l, i: (0, 0)),               # XW_0 (resident)
                pl.BlockSpec((g_pad, tm), p_index_map),                       # pooling columns
                pl.BlockSpec((num_layers, fp, fp), lambda l, i: (0, 0, 0)),   # layer weights
                pl.BlockSpec((num_layers, 1, fp), lambda l, i: (0, 0, 0)),    # layer biases
                pl.BlockSpec((fp, outp), lambda l, i: (0, 0)),                # classifier weight
                pl.BlockSpec((1, outp), lambda l, i: (0, 0)),                 # classifier bias
            ],
            out_specs=pl.BlockSpec((g_pad, outp), lambda l, i: (0, 0)),
            scratch_shapes=[
                pltpu.VMEM((2, n_pad, fp), jnp.bfloat16),   # XW ping-pong buffers
                pltpu.VMEM((g_pad, fp), jnp.float32),       # mean-pool accumulator
            ],
        ),
        compiler_params=pltpu.CompilerParams(
            # Layers are serialized through xw_ref; row blocks feed the shared pool accumulator.
            dimension_semantics=("arbitrary", "arbitrary"),
            vmem_limit_bytes=vmem_limit,
        ),
        cost_estimate=cost,
    )(a_hat, xw0, p, w_stack, b_stack, wc_pad, bc_pad)


# ------------------------------------------------------------------------------- glue
def _round_up(v, m):
    return (v + m - 1) // m * m


def build_normalized_adjacency(edge_index, edge_weight, num_nodes, n_pad):
    """Dense D^{-1/2}(A+I)D^{-1/2} (torch_geometric gcn_norm), zero-padded to (n_pad, n_pad), bf16."""
    src = edge_index[0]
    dst = edge_index[1]
    loop = jnp.arange(num_nodes, dtype=src.dtype)
    src = jnp.concatenate([src, loop])
    dst = jnp.concatenate([dst, loop])
    w = jnp.concatenate(
        [edge_weight.astype(jnp.float32), jnp.ones((num_nodes,), jnp.float32)]
    )
    deg = jnp.zeros((num_nodes,), jnp.float32).at[dst].add(w)
    dinv = jnp.where(deg > 0, jax.lax.rsqrt(deg), 0.0)
    norm = dinv[src] * w * dinv[dst]
    # message flows source -> target: out[i] = sum_j A_hat[i, j] * x[j]
    a_hat = jnp.zeros((n_pad, n_pad), jnp.float32).at[dst, src].add(norm)
    return a_hat.astype(jnp.bfloat16)


def build_mean_pool_matrix(batch, num_graphs, n_pad, g_pad):
    """(g_pad, n_pad) mean-pool matrix; padded nodes/graphs contribute zero."""
    n = batch.shape[0]
    batch_pad = jnp.full((n_pad,), -1, batch.dtype).at[:n].set(batch)
    onehot = (batch_pad[None, :] == jnp.arange(g_pad, dtype=batch.dtype)[:, None]
              ).astype(jnp.float32)
    counts = onehot.sum(axis=1, keepdims=True)
    return onehot / jnp.maximum(counts, 1.0)


def _prepare_padded_operands(params, x, edge_index, edge_weight, batch,
                             num_nodes, num_graphs, block_rows):
    in_c = x.shape[1]
    hid = params["w1"].shape[1]
    out_c = params["wc"].shape[1]
    fp = _round_up(max(in_c, hid), 128)       # lane-dense feature/hidden dim
    outp = _round_up(out_c, 128)              # lane-dense classifier output
    n_pad = _round_up(num_nodes, max(block_rows, 128))
    g_pad = _round_up(num_graphs, 8)

    a_hat = build_normalized_adjacency(edge_index, edge_weight, num_nodes, n_pad)
    p = build_mean_pool_matrix(batch, num_graphs, n_pad, g_pad)
    x_pad = (jnp.zeros((n_pad, fp), jnp.float32)
             .at[:num_nodes, :in_c].set(x).astype(jnp.bfloat16))

    w_stack = jnp.zeros((4, fp, fp), jnp.float32)
    w_stack = w_stack.at[0, :in_c, :hid].set(params["w1"])
    w_stack = w_stack.at[1, :hid, :hid].set(params["w2"])
    w_stack = w_stack.at[2, :hid, :hid].set(params["w3"])
    w_stack = w_stack.at[3, :hid, :hid].set(params["w4"])
    w_stack = w_stack.astype(jnp.bfloat16)

    b_stack = jnp.zeros((4, 1, fp), jnp.float32)
    b_stack = b_stack.at[0, 0, :hid].set(params["b1"])
    b_stack = b_stack.at[1, 0, :hid].set(params["b2"])
    b_stack = b_stack.at[2, 0, :hid].set(params["b3"])
    b_stack = b_stack.at[3, 0, :hid].set(params["b4"])

    wc_pad = jnp.zeros((fp, outp), jnp.float32).at[:hid, :out_c].set(params["wc"])
    bc_pad = jnp.zeros((1, outp), jnp.float32).at[0, :out_c].set(params["bc"])

    # XW_0 hoisted out of the kernel (wrapper-side XLA matmul; same precision policy as in-kernel
    # folds: bf16 operands, f32 MXU accumulation, bf16 round-trip).
    xw0 = jnp.dot(x_pad, w_stack[0],
                  preferred_element_type=jnp.float32).astype(jnp.bfloat16)

    return (a_hat, xw0, p, w_stack, b_stack, wc_pad, bc_pad), out_c


def init_params(key, in_channels, hidden_channels, out_channels=1):
    ks = jax.random.split(key, 10)
    dims = [(in_channels, hidden_channels)] + [(hidden_channels, hidden_channels)] * 3
    params = {}
    for i, (fi, fo) in enumerate(dims):
        scale = 1.0 / jnp.sqrt(jnp.float32(fi))
        params[f"w{i + 1}"] = jax.random.uniform(
            ks[2 * i], (fi, fo), jnp.float32, -scale, scale)
        params[f"b{i + 1}"] = jax.random.uniform(
            ks[2 * i + 1], (fo,), jnp.float32, -scale, scale)
    scale = 1.0 / jnp.sqrt(jnp.float32(hidden_channels))
    params["wc"] = jax.random.uniform(
        ks[8], (hidden_channels, out_channels), jnp.float32, -scale, scale)
    params["bc"] = jax.random.uniform(ks[9], (out_channels,), jnp.float32, -scale, scale)
    return params


@functools.partial(jax.jit,
                   static_argnames=("num_nodes", "num_graphs", "block_rows", "force_stream_a"))
def gcn_summarizer_forward(params, x, edge_index, edge_weight, batch, *,
                           num_nodes, num_graphs, block_rows=256, force_stream_a=False):
    assert block_rows % 128 == 0, "block_rows must be a multiple of 128"
    ops, out_c = _prepare_padded_operands(
        params, x, edge_index, edge_weight, batch, num_nodes, num_graphs, block_rows)
    out_pad = fused_gcn_forward(*ops, block_rows=block_rows, force_stream_a=force_stream_a)
    return out_pad[:num_graphs, :out_c]


def reference_forward(params, x, edge_index, edge_weight, batch, *,
                      num_nodes, num_graphs, block_rows=256):
    """Plain-XLA reference with identical padding/precision policy."""
    (a, xw0, p, w, b, wc, bc), out_c = _prepare_padded_operands(
        params, x, edge_index, edge_weight, batch, num_nodes, num_graphs, block_rows)
    xw = xw0
    h = None
    for l in range(w.shape[0]):
        h = jnp.maximum(jnp.dot(a, xw, preferred_element_type=jnp.float32) + b[l], 0.0)
        if l + 1 < w.shape[0]:
            xw = jnp.dot(h.astype(jnp.bfloat16), w[l + 1],
                         preferred_element_type=jnp.float32).astype(jnp.bfloat16)
    pooled = jnp.dot(p, h, preferred_element_type=jnp.float32)
    logits = jnp.dot(pooled, wc, preferred_element_type=jnp.float32) + bc
    return jax.nn.sigmoid(logits)[:num_graphs, :out_c]


# -------------------------------------------------------------------------------- main
if __name__ == "__main__":
    key = jax.random.PRNGKey(0)
    k_feat, k_es, k_ed, k_w, k_param = jax.random.split(key, 5)

    num_nodes = 200          # two graphs, 100 nodes each
    num_graphs = 2
    in_channels = 8
    hidden_channels = 32
    num_edges = 400

    x = jax.random.normal(k_feat, (num_nodes, in_channels), jnp.float32)

    # edges kept within each graph: graph 0 -> nodes 0..99, graph 1 -> nodes 100..199
    half = num_edges // 2
    src0 = jax.random.randint(k_es, (half,), 0, 100)
    dst0 = jax.random.randint(k_ed, (half,), 0, 100)
    src1 = jax.random.randint(k_es, (half,), 100, 200)
    dst1 = jax.random.randint(k_ed, (half,), 100, 200)
    edge_index = jnp.stack(
        [jnp.concatenate([src0, src1]), jnp.concatenate([dst0, dst1])], axis=0
    ).astype(jnp.int32)
    edge_weight = jax.random.uniform(k_w, (num_edges,), jnp.float32, 0.1, 1.0)
    batch = jnp.concatenate(
        [jnp.zeros((100,), jnp.int32), jnp.ones((100,), jnp.int32)])

    params = init_params(k_param, in_channels, hidden_channels, out_channels=1)

    # Path 1: default config (A_hat VMEM-resident, tm=256).
    out = gcn_summarizer_forward(
        params, x, edge_index, edge_weight, batch,
        num_nodes=num_nodes, num_graphs=num_graphs)
    out = jax.block_until_ready(out)
    ref = reference_forward(
        params, x, edge_index, edge_weight, batch,
        num_nodes=num_nodes, num_graphs=num_graphs)
    assert out.shape == (num_graphs, 1)
    assert bool(jnp.all((out >= 0.0) & (out <= 1.0)))
    assert bool(jnp.max(jnp.abs(out - ref)) < 2e-2), float(jnp.max(jnp.abs(out - ref)))

    # Path 2: forced row-panel streaming with multiple row blocks (exercises the fallback path,
    # the XW ping-pong row slicing and the pool accumulation across blocks).
    out_s = gcn_summarizer_forward(
        params, x, edge_index, edge_weight, batch,
        num_nodes=num_nodes, num_graphs=num_graphs,
        block_rows=128, force_stream_a=True)
    out_s = jax.block_until_ready(out_s)
    ref_s = reference_forward(
        params, x, edge_index, edge_weight, batch,
        num_nodes=num_nodes, num_graphs=num_graphs, block_rows=128)
    assert bool(jnp.max(jnp.abs(out_s - ref_s)) < 2e-2), float(jnp.max(jnp.abs(out_s - ref_s)))

    print("KERNEL_OK")
</pallas_src>

<mosaic_0001>
module attributes {stable_mosaic.version = 11 : i64} {
  func.func @fused_gcn_kernel(%arg0: i32, %arg1: i32, %arg2: memref<256x256xbf16, #tpu.memory_space<vmem>>, %arg3: memref<256x128xbf16, #tpu.memory_space<vmem>>, %arg4: memref<8x256xf32, #tpu.memory_space<vmem>>, %arg5: memref<4x128x128xbf16, #tpu.memory_space<vmem>>, %arg6: memref<4x1x128xf32, #tpu.memory_space<vmem>>, %arg7: memref<128x128xf32, #tpu.memory_space<vmem>>, %arg8: memref<1x128xf32, #tpu.memory_space<vmem>>, %arg9: memref<8x128xf32, #tpu.memory_space<vmem>>, %arg10: memref<2x256x128xbf16, #tpu.memory_space<vmem>>, %arg11: memref<8x128xf32, #tpu.memory_space<vmem>>) attributes {dimension_semantics = [#tpu.dimension_semantics<arbitrary>, #tpu.dimension_semantics<arbitrary>], iteration_bounds = array<i64: 4, 1>, scalar_prefetch = 0 : i64, scratch_operands = 2 : i64, tpu.core_type = #tpu.core_type<tc>, window_params = [{pipeline_mode = #tpu.pipeline_mode<synchronous>, transform_indices = @transform_0, window_bounds = array<i64: 256, 256>}, {pipeline_mode = #tpu.pipeline_mode<synchronous>, transform_indices = @transform_1, window_bounds = array<i64: 256, 128>}, {transform_indices = @transform_2, window_bounds = array<i64: 8, 256>}, {pipeline_mode = #tpu.pipeline_mode<synchronous>, transform_indices = @transform_3, window_bounds = array<i64: 4, 128, 128>}, {pipeline_mode = #tpu.pipeline_mode<synchronous>, transform_indices = @transform_4, window_bounds = array<i64: 4, 1, 128>}, {pipeline_mode = #tpu.pipeline_mode<synchronous>, transform_indices = @transform_5, window_bounds = array<i64: 128, 128>}, {pipeline_mode = #tpu.pipeline_mode<synchronous>, transform_indices = @transform_6, window_bounds = array<i64: 1, 128>}, {pipeline_mode = #tpu.pipeline_mode<synchronous>, transform_indices = @transform_7, window_bounds = array<i64: 8, 128>}]} {
    %c256_i32 = arith.constant 256 : i32
    %0 = arith.muli %arg1, %c256_i32 : i32
    %1 = tpu.assume_multiple %0, 256 : i32
    %c0_i32 = arith.constant 0 : i32
    %2 = arith.cmpi eq, %arg0, %c0_i32 : i32
    %c0_i32_0 = arith.constant 0 : i32
    %3 = arith.cmpi eq, %arg1, %c0_i32_0 : i32
    %4 = arith.andi %2, %3 : i1
    %5 = arith.extui %4 : i1 to i32
    %c0_i32_1 = arith.constant 0 : i32
    %6 = arith.cmpi ne, %5, %c0_i32_1 : i32
    scf.if %6 {
      %c0_17 = arith.constant 0 : index
      %c0_18 = arith.constant 0 : index
      %41 = vector.load %arg3[%c0_17, %c0_18] : memref<256x128xbf16, #tpu.memory_space<vmem>>, vector<256x128xbf16>
      %c0_19 = arith.constant 0 : index
      %c0_20 = arith.constant 0 : index
      %c0_21 = arith.constant 0 : index
      %42 = vector.load %arg10[%c0_19, %c0_20, %c0_21] : memref<2x256x128xbf16, #tpu.memory_space<vmem>>, vector<1x256x128xbf16>
      %43 = vector.shape_cast %42 : vector<1x256x128xbf16> to vector<256x128xbf16>
      %44 = vector.shape_cast %41 : vector<256x128xbf16> to vector<1x256x128xbf16>
      tpu.vector_store %arg10[%c0_19, %c0_20, %c0_21], %44 {strides = array<i32>} : memref<2x256x128xbf16, #tpu.memory_space<vmem>>, vector<1x256x128xbf16>,
      %cst_22 = arith.constant 0.000000e+00 : f32
      %45 = vector.broadcast %cst_22 : f32 to vector<8x128xf32>
      %c0_23 = arith.constant 0 : index
      %c0_24 = arith.constant 0 : index
      %46 = vector.load %arg11[%c0_23, %c0_24] : memref<8x128xf32, #tpu.memory_space<vmem>>, vector<8x128xf32>
      tpu.vector_store %arg11[%c0_23, %c0_24], %45 {strides = array<i32>} : memref<8x128xf32, #tpu.memory_space<vmem>>, vector<8x128xf32>,
    } else {
    }
    %7 = arith.index_cast %1 : i32 to index
    %c0 = arith.constant 0 : index
    %8 = vector.load %arg2[%7, %c0] : memref<256x256xbf16, #tpu.memory_space<vmem>>, vector<256x256xbf16>
    %c2_i32 = arith.constant 2 : i32
    %c0_i32_2 = arith.constant 0 : i32
    %9 = arith.cmpi eq, %c2_i32, %c0_i32_2 : i32
    %c1_i32 = arith.constant 1 : i32
    %10 = arith.select %9, %c1_i32, %c2_i32 : i32
    %11 = arith.remsi %arg0, %10 : i32
    %c0_i32_3 = arith.constant 0 : i32
    %12 = arith.cmpi ne, %11, %c0_i32_3 : i32
    %c0_i32_4 = arith.constant 0 : i32
    %13 = arith.cmpi slt, %11, %c0_i32_4 : i32
    %c0_i32_5 = arith.constant 0 : i32
    %14 = arith.cmpi slt, %10, %c0_i32_5 : i32
    %15 = arith.xori %13, %14 : i1
    %16 = arith.andi %15, %12 : i1
    %17 = arith.addi %11, %10 : i32
    %18 = arith.select %16, %17, %11 : i32
    %19 = arith.index_cast %18 : i32 to index
    %c0_6 = arith.constant 0 : index
    %c0_7 = arith.constant 0 : index
    %20 = vector.load %arg10[%19, %c0_6, %c0_7] : memref<2x256x128xbf16, #tpu.memory_space<vmem>>, vector<1x256x128xbf16>
    %21 = vector.shape_cast %20 : vector<1x256x128xbf16> to vector<256x128xbf16>
    %cst = arith.constant dense<0.000000e+00> : vector<256x128xf32>
    %22 = tpu.matmul %8, %21, %cst {dimension_numbers = #tpu.dot_dimension_numbers<[1], [0], [0], [1], [0, 0, 1, 1], [], []>} : vector<256x256xbf16>, vector<256x128xbf16>, vector<256x128xf32> -> vector<256x128xf32>
    %23 = arith.index_cast %arg0 : i32 to index
    %c0_8 = arith.constant 0 : index
    %c0_9 = arith.constant 0 : index
    %24 = vector.load %arg6[%23, %c0_8, %c0_9] : memref<4x1x128xf32, #tpu.memory_space<vmem>>, vector<1x1x128xf32>
    %25 = vector.shape_cast %24 : vector<1x1x128xf32> to vector<1x128xf32>
    %26 = vector.broadcast %25 : vector<1x128xf32> to vector<256x128xf32>
    %27 = arith.addf %22, %26 : vector<256x128xf32>
    %cst_10 = arith.constant 0.000000e+00 : f32
    %28 = vector.broadcast %cst_10 : f32 to vector<256x128xf32>
    %29 = arith.maximumf %27, %28 : vector<256x128xf32>
    %c3_i32 = arith.constant 3 : i32
    %30 = arith.cmpi slt, %arg0, %c3_i32 : i32
    %31 = arith.extui %30 : i1 to i32
    %c0_i32_11 = arith.constant 0 : i32
    %32 = arith.cmpi ne, %31, %c0_i32_11 : i32
    scf.if %32 {
      %c1_i32_17 = arith.constant 1 : i32
      %41 = arith.addi %arg0, %c1_i32_17 : i32
      %c3_i32_18 = arith.constant 3 : i32
      %42 = arith.minsi %41, %c3_i32_18 : i32
      %43 = arith.truncf %29 : vector<256x128xf32> to vector<256x128xbf16>
      %44 = arith.index_cast %42 : i32 to index
      %c0_19 = arith.constant 0 : index
      %c0_20 = arith.constant 0 : index
      %45 = vector.load %arg5[%44, %c0_19, %c0_20] : memref<4x128x128xbf16, #tpu.memory_space<vmem>>, vector<1x128x128xbf16>
      %46 = vector.shape_cast %45 : vector<1x128x128xbf16> to vector<128x128xbf16>
      %cst_21 = arith.constant dense<0.000000e+00> : vector<256x128xf32>
      %47 = tpu.matmul %43, %46, %cst_21 {dimension_numbers = #tpu.dot_dimension_numbers<[1], [0], [0], [1], [0, 0, 1, 1], [], []>} : vector<256x128xbf16>, vector<128x128xbf16>, vector<256x128xf32> -> vector<256x128xf32>
      %48 = arith.truncf %47 : vector<256x128xf32> to vector<256x128xbf16>
      %c1_i32_22 = arith.constant 1 : i32
      %49 = arith.addi %arg0, %c1_i32_22 : i32
      %c2_i32_23 = arith.constant 2 : i32
      %c0_i32_24 = arith.constant 0 : i32
      %50 = arith.cmpi eq, %c2_i32_23, %c0_i32_24 : i32
      %c1_i32_25 = arith.constant 1 : i32
      %51 = arith.select %50, %c1_i32_25, %c2_i32_23 : i32
      %52 = arith.remsi %49, %51 : i32
      %c0_i32_26 = arith.constant 0 : i32
      %53 = arith.cmpi ne, %52, %c0_i32_26 : i32
      %c0_i32_27 = arith.constant 0 : i32
      %54 = arith.cmpi slt, %52, %c0_i32_27 : i32
      %c0_i32_28 = arith.constant 0 : i32
      %55 = arith.cmpi slt, %51, %c0_i32_28 : i32
      %56 = arith.xori %54, %55 : i1
      %57 = arith.andi %56, %53 : i1
      %58 = arith.addi %52, %51 : i32
      %59 = arith.select %57, %58, %52 : i32
      %60 = arith.index_cast %59 : i32 to index
      %61 = arith.index_cast %1 : i32 to index
      %c0_29 = arith.constant 0 : index
      %62 = vector.load %arg10[%60, %61, %c0_29] : memref<2x256x128xbf16, #tpu.memory_space<vmem>>, vector<1x256x128xbf16>
      %63 = vector.shape_cast %62 : vector<1x256x128xbf16> to vector<256x128xbf16>
      %64 = vector.shape_cast %48 : vector<256x128xbf16> to vector<1x256x128xbf16>
      tpu.vector_store %arg10[%60, %61, %c0_29], %64 {strides = array<i32>} : memref<2x256x128xbf16, #tpu.memory_space<vmem>>, vector<1x256x128xbf16>,
    } else {
    }
    %c3_i32_12 = arith.constant 3 : i32
    %33 = arith.cmpi eq, %arg0, %c3_i32_12 : i32
    %34 = arith.extui %33 : i1 to i32
    %c0_i32_13 = arith.constant 0 : i32
    %35 = arith.cmpi ne, %34, %c0_i32_13 : i32
    scf.if %35 {
      %c0_17 = arith.constant 0 : index
      %c0_18 = arith.constant 0 : index
      %41 = vector.load %arg11[%c0_17, %c0_18] : memref<8x128xf32, #tpu.memory_space<vmem>>, vector<8x128xf32>
      %c0_19 = arith.constant 0 : index
      %c0_20 = arith.constant 0 : index
      %42 = vector.load %arg4[%c0_19, %c0_20] : memref<8x256xf32, #tpu.memory_space<vmem>>, vector<8x256xf32>
      %cst_21 = arith.constant dense<0.000000e+00> : vector<8x128xf32>
      %43 = tpu.matmul %42, %29, %cst_21 {dimension_numbers = #tpu.dot_dimension_numbers<[1], [0], [0], [1], [0, 0, 1, 1], [], []>} : vector<8x256xf32>, vector<256x128xf32>, vector<8x128xf32> -> vector<8x128xf32>
      %44 = arith.addf %41, %43 : vector<8x128xf32>
      %c0_22 = arith.constant 0 : index
      %c0_23 = arith.constant 0 : index
      %45 = vector.load %arg11[%c0_22, %c0_23] : memref<8x128xf32, #tpu.memory_space<vmem>>, vector<8x128xf32>
      tpu.vector_store %arg11[%c0_22, %c0_23], %44 {strides = array<i32>} : memref<8x128xf32, #tpu.memory_space<vmem>>, vector<8x128xf32>,
    } else {
    }
    %c3_i32_14 = arith.constant 3 : i32
    %36 = arith.cmpi eq, %arg0, %c3_i32_14 : i32
    %c0_i32_15 = arith.constant 0 : i32
    %37 = arith.cmpi eq, %arg1, %c0_i32_15 : i32
    %38 = arith.andi %36, %37 : i1
    %39 = arith.extui %38 : i1 to i32
    %c0_i32_16 = arith.constant 0 : i32
    %40 = arith.cmpi ne, %39, %c0_i32_16 : i32
    scf.if %40 {
      %c0_17 = arith.constant 0 : index
      %c0_18 = arith.constant 0 : index
      %41 = vector.load %arg11[%c0_17, %c0_18] : memref<8x128xf32, #tpu.memory_space<vmem>>, vector<8x128xf32>
      %c0_19 = arith.constant 0 : index
      %c0_20 = arith.constant 0 : index
      %42 = vector.load %arg7[%c0_19, %c0_20] : memref<128x128xf32, #tpu.memory_space<vmem>>, vector<128x128xf32>
      %cst_21 = arith.constant dense<0.000000e+00> : vector<8x128xf32>
      %43 = tpu.matmul %41, %42, %cst_21 {dimension_numbers = #tpu.dot_dimension_numbers<[1], [0], [0], [1], [0, 0, 1, 1], [], []>} : vector<8x128xf32>, vector<128x128xf32>, vector<8x128xf32> -> vector<8x128xf32>
      %c0_22 = arith.constant 0 : index
      %c0_23 = arith.constant 0 : index
      %44 = vector.load %arg8[%c0_22, %c0_23] : memref<1x128xf32, #tpu.memory_space<vmem>>, vector<1x128xf32>
      %45 = vector.broadcast %44 : vector<1x128xf32> to vector<8x128xf32>
      %46 = arith.addf %43, %45 : vector<8x128xf32>
      %47 = arith.negf %46 : vector<8x128xf32>
      %48 = math.exp %47 : vector<8x128xf32>
      %cst_24 = arith.constant 1.000000e+00 : f32
      %49 = vector.broadcast %cst_24 : f32 to vector<8x128xf32>
      %50 = arith.addf %49, %48 : vector<8x128xf32>
      %51 = arith.divf %49, %50 : vector<8x128xf32>
      %c0_25 = arith.constant 0 : index
      %c0_26 = arith.constant 0 : index
      %52 = vector.load %arg9[%c0_25, %c0_26] : memref<8x128xf32, #tpu.memory_space<vmem>>, vector<8x128xf32>
      tpu.vector_store %arg9[%c0_25, %c0_26], %51 {strides = array<i32>} : memref<8x128xf32, #tpu.memory_space<vmem>>, vector<8x128xf32>,
    } else {
    }
    return
  }
  func.func @transform_0(%arg0: i32, %arg1: i32) -> (i32, i32) {
    %c0_i32 = arith.constant 0 : i32
    %c0_i32_0 = arith.constant 0 : i32
    %c0_i32_1 = arith.constant 0 : i32
    return %c0_i32, %c0_i32_0 : i32, i32
  }
  func.func @transform_1(%arg0: i32, %arg1: i32) -> (i32, i32) {
    %c0_i32 = arith.constant 0 : i32
    %c0_i32_0 = arith.constant 0 : i32
    %c0_i32_1 = arith.constant 0 : i32
    return %c0_i32, %c0_i32_0 : i32, i32
  }
  func.func @transform_2(%arg0: i32, %arg1: i32) -> (i32, i32) {
    %c3_i32 = arith.constant 3 : i32
    %0 = arith.cmpi eq, %arg0, %c3_i32 : i32
    %c0_i32 = arith.constant 0 : i32
    %1 = arith.select %0, %arg1, %c0_i32 : i32
    %c0_i32_0 = arith.constant 0 : i32
    %c0_i32_1 = arith.constant 0 : i32
    return %c0_i32_0, %1 : i32, i32
  }
  func.func @transform_3(%arg0: i32, %arg1: i32) -> (i32, i32, i32) {
    %c0_i32 = arith.constant 0 : i32
    %c0_i32_0 = arith.constant 0 : i32
    %c0_i32_1 = arith.constant 0 : i32
    %c0_i32_2 = arith.constant 0 : i32
    return %c0_i32, %c0_i32_0, %c0_i32_1 : i32, i32, i32
  }
  func.func @transform_4(%arg0: i32, %arg1: i32) -> (i32, i32, i32) {
    %c0_i32 = arith.constant 0 : i32
    %c0_i32_0 = arith.constant 0 : i32
    %c0_i32_1 = arith.constant 0 : i32
    %c0_i32_2 = arith.constant 0 : i32
    return %c0_i32, %c0_i32_0, %c0_i32_1 : i32, i32, i32
  }
  func.func @transform_5(%arg0: i32, %arg1: i32) -> (i32, i32) {
    %c0_i32 = arith.constant 0 : i32
    %c0_i32_0 = arith.constant 0 : i32
    %c0_i32_1 = arith.constant 0 : i32
    return %c0_i32, %c0_i32_0 : i32, i32
  }
  func.func @transform_6(%arg0: i32, %arg1: i32) -> (i32, i32) {
    %c0_i32 = arith.constant 0 : i32
    %c0_i32_0 = arith.constant 0 : i32
    %c0_i32_1 = arith.constant 0 : i32
    return %c0_i32, %c0_i32_0 : i32, i32
  }
  func.func @transform_7(%arg0: i32, %arg1: i32) -> (i32, i32) {
    %c0_i32 = arith.constant 0 : i32
    %c0_i32_0 = arith.constant 0 : i32
    %c0_i32_1 = arith.constant 0 : i32
    return %c0_i32, %c0_i32_0 : i32, i32
  }
}

</mosaic_0001>

<llo_original>
// kernel: gcn_summarizer_forward.1
$region0: #{gcn_summarizer_forward.1}
  #allocation0 [shape = 'u32[]', space=smem, size = 0x4, offset = 0x4, fixed_abs, tag = 'smem constant byte address 0x4 - core index']
  #allocation1 [shape = 'u32[144,128]{1,0:T(1,128)}', space=vmem, size = 0x12000, scoped, tag = 'internal scratch']
  #allocation2 [shape = 'bf16[2,256,128]{2,1,0:T(16,128)(2,1)}', space=vmem, size = 0x20000, scoped, tag = 'scratch operand']
  #allocation3 [shape = 'f32[8,128]{1,0:T(8,128)}', space=vmem, size = 0x1000, scoped, tag = 'scratch operand']
  %s0 = inlined_call_operand.vmem [shape: bf16[256,256], index: 0, kind: input, shape index: {}]
  %s1 = inlined_call_operand.vmem [shape: bf16[256,128], index: 1, kind: input, shape index: {}]
  %s2 = inlined_call_operand.vmem [shape: f32[8,256], index: 2, kind: input, shape index: {}]
  %s3 = inlined_call_operand.vmem [shape: bf16[4,128,128], index: 3, kind: input, shape index: {}]
  %s4 = inlined_call_operand.vmem [shape: f32[4,1,128], index: 4, kind: input, shape index: {}]
  %s5 = inlined_call_operand.vmem [shape: f32[128,128], index: 5, kind: input, shape index: {}]
  %s6 = inlined_call_operand.vmem [shape: f32[1,128], index: 6, kind: input, shape index: {}]
  %s7 = inlined_call_operand.vmem [shape: f32[8,128], index: 7, kind: output, shape index: {}]
  %s8 = sld [smem:[#allocation0]]
  $region77: #{gcn_summarizer_forward.1} parent=0
    _
  %s10 = ssub.s32 1, %s8
  %s11 = scalar_select 0, %s10, %s8
  loop: start=0, step=1, limit=6
  $region2: #{gcn_summarizer_forward.1} parent=0 // loop_pre_header
    _
  $region3: #{gcn_summarizer_forward.1} parent=0 // loop_header
    %s13 = sphi 0, %s17
    %p14 = scmp.ge.s32.totalorder %s13, 6
    %s20 = sphi 0, %s32
    %s21 = sphi 0, %s28
    %s22 = sphi 0, %s20
    %s23 = sphi 0, %s21
    %s24 = sphi 0, %s22
    %s25 = sphi 0, %s23
    %s33 = sphi 0, %s33
    %s35 = sphi 0, %s33
    %s36 = sphi 0, %s35
    %s50 = sphi 0, %s36
    %s54 = sphi 0, %s54
    %s56 = sphi 0, %s54
    %s57 = sphi 0, %s56
    %s71 = sphi 0, %s57
    %s81 = sphi 0, %s83
    %s84 = sphi 0, %s81
    %s85 = sphi 0, %s84
    %s101 = sphi 0, %s85
    %s105 = sphi 0, %s105
    %s107 = sphi 0, %s105
    %s108 = sphi 0, %s107
    %s122 = sphi 0, %s108
    %s126 = sphi 0, %s126
    %s128 = sphi 0, %s126
    %s129 = sphi 0, %s128
    %s143 = sphi 0, %s129
    %s147 = sphi 0, %s147
    %s149 = sphi 0, %s147
    %s150 = sphi 0, %s149
    %s164 = sphi 0, %s150
    %s168 = sphi 0, %s168
    %s170 = sphi 0, %s168
    %s171 = sphi 0, %s170
    %s185 = sphi 0, %s171
    %s189 = sphi 0, %s189
    %s191 = sphi 0, %s189
    %s192 = sphi 0, %s191
    %s206 = sphi 0, %s192
  $region4: #{gcn_summarizer_forward.1} parent=0 // loop_header_branch
    %16 = sbr.rel (%p14) target = $region8
  $region5: #{gcn_summarizer_forward.1} parent=0 // loop_body
    %s18 = ssub.s32 %s13, 1
    %s19 = ssub.s32 %s13, 2
    %s26 = sadd.s32 1, %s21
    %p27 = scmp.ge.s32.totalorder %s26, 1
    %s28 = scalar_select %p27, 0, %s26
    %s29 = sadd.s32 1, %s20
    %s30 = scalar_select %p27, %s29, %s20
    %p31 = scmp.ge.s32.totalorder %s30, 4
    %s32 = scalar_select %p31, 0, %s30
    %s34 = sadd.s32 %s33, 1
    %p37 = scmp.eq.s32.totalorder %s13, 3
    %p38 = scmp.ne.s32.totalorder %s33, %s35
    %p39 = scmp.eq.s32.totalorder %s13, 0
    %p40 = por %p38, %p39
    %p41 = scmp.ne.s32.totalorder %s33, %s35
    %p42 = scmp.eq.s32.totalorder %s18, 3
    %p43 = por %p41, %p42
    %p44 = scmp.ne.s32.totalorder %s35, %s36
    %p45 = scmp.eq.s32.totalorder %s18, 0
    %p46 = por %p44, %p45
    %p47 = scmp.ne.s32.totalorder %s35, %s36
    %p48 = scmp.eq.s32.totalorder %s19, 3
    %p49 = por %p47, %p48
    %p51 = scmp.ne.s32.totalorder %s36, %s50
    %p52 = scmp.eq.s32.totalorder %s19, 0
    %p53 = por %p51, %p52
    %s55 = sadd.s32 %s54, 1
    %p58 = scmp.eq.s32.totalorder %s13, 3
    %p59 = scmp.ne.s32.totalorder %s54, %s56
    %p60 = scmp.eq.s32.totalorder %s13, 0
    %p61 = por %p59, %p60
    %p62 = scmp.ne.s32.totalorder %s54, %s56
    %p63 = scmp.eq.s32.totalorder %s18, 3
    %p64 = por %p62, %p63
    %p65 = scmp.ne.s32.totalorder %s56, %s57
    %p66 = scmp.eq.s32.totalorder %s18, 0
    %p67 = por %p65, %p66
    %p68 = scmp.ne.s32.totalorder %s56, %s57
    %p69 = scmp.eq.s32.totalorder %s19, 3
    %p70 = por %p68, %p69
    %p72 = scmp.ne.s32.totalorder %s57, %s71
    %p73 = scmp.eq.s32.totalorder %s19, 0
    %p74 = por %p72, %p73
    %p75 = scmp.eq.s32.totalorder %s20, 3
    %s76 = scalar_select %p75, %s21, 0
    %p77 = scmp.eq.s32.totalorder %s32, 3
    %s78 = scalar_select %p77, %s28, 0
    %s79 = ssub.s32 %s76, %s78
    %p80 = scmp.eq.s32.totalorder %s79, 0
    %s82 = sadd.s32 %s81, 1
    %s83 = scalar_select %p80, %s81, %s82
    %p86 = pneg %p80
    %p87 = scmp.eq.s32.totalorder %s13, 3
    %p88 = por %p86, %p87
    %p89 = scmp.ne.s32.totalorder %s81, %s84
    %p90 = scmp.eq.s32.totalorder %s13, 0
    %p91 = por %p89, %p90
    %p92 = scmp.ne.s32.totalorder %s81, %s84
    %p93 = scmp.eq.s32.totalorder %s18, 3
    %p94 = por %p92, %p93
    %p95 = scmp.ne.s32.totalorder %s84, %s85
    %p96 = scmp.eq.s32.totalorder %s18, 0
    %p97 = por %p95, %p96
    %p98 = scmp.ne.s32.totalorder %s84, %s85
    %p99 = scmp.eq.s32.totalorder %s19, 3
    %p100 = por %p98, %p99
    %p102 = scmp.ne.s32.totalorder %s85, %s101
    %p103 = scmp.eq.s32.totalorder %s19, 0
    %p104 = por %p102, %p103
    %s106 = sadd.s32 %s105, 1
    %p109 = scmp.eq.s32.totalorder %s13, 3
    %p110 = scmp.ne.s32.totalorder %s105, %s107
    %p111 = scmp.eq.s32.totalorder %s13, 0
    %p112 = por %p110, %p111
    %p113 = scmp.ne.s32.totalorder %s105, %s107
    %p114 = scmp.eq.s32.totalorder %s18, 3
    %p115 = por %p113, %p114
    %p116 = scmp.ne.s32.totalorder %s107, %s108
    %p117 = scmp.eq.s32.totalorder %s18, 0
    %p118 = por %p116, %p117
    %p119 = scmp.ne.s32.totalorder %s107, %s108
    %p120 = scmp.eq.s32.totalorder %s19, 3
    %p121 = por %p119, %p120
    %p123 = scmp.ne.s32.totalorder %s108, %s122
    %p124 = scmp.eq.s32.totalorder %s19, 0
    %p125 = por %p123, %p124
    %s127 = sadd.s32 %s126, 1
    %p130 = scmp.eq.s32.totalorder %s13, 3
    %p131 = scmp.ne.s32.totalorder %s126, %s128
    %p132 = scmp.eq.s32.totalorder %s13, 0
    %p133 = por %p131, %p132
    %p134 = scmp.ne.s32.totalorder %s126, %s128
    %p135 = scmp.eq.s32.totalorder %s18, 3
    %p136 = por %p134, %p135
    %p137 = scmp.ne.s32.totalorder %s128, %s129
    %p138 = scmp.eq.s32.totalorder %s18, 0
    %p139 = por %p137, %p138
    %p140 = scmp.ne.s32.totalorder %s128, %s129
    %p141 = scmp.eq.s32.totalorder %s19, 3
    %p142 = por %p140, %p141
    %p144 = scmp.ne.s32.totalorder %s129, %s143
    %p145 = scmp.eq.s32.totalorder %s19, 0
    %p146 = por %p144, %p145
    %s148 = sadd.s32 %s147, 1
    %p151 = scmp.eq.s32.totalorder %s13, 3
    %p152 = scmp.ne.s32.totalorder %s147, %s149
    %p153 = scmp.eq.s32.totalorder %s13, 0
    %p154 = por %p152, %p153
    %p155 = scmp.ne.s32.totalorder %s147, %s149
    %p156 = scmp.eq.s32.totalorder %s18, 3
    %p157 = por %p155, %p156
    %p158 = scmp.ne.s32.totalorder %s149, %s150
    %p159 = scmp.eq.s32.totalorder %s18, 0
    %p160 = por %p158, %p159
    %p161 = scmp.ne.s32.totalorder %s149, %s150
    %p162 = scmp.eq.s32.totalorder %s19, 3
    %p163 = por %p161, %p162
    %p165 = scmp.ne.s32.totalorder %s150, %s164
    %p166 = scmp.eq.s32.totalorder %s19, 0
    %p167 = por %p165, %p166
    %s169 = sadd.s32 %s168, 1
    %p172 = scmp.eq.s32.totalorder %s13, 3
    %p173 = scmp.ne.s32.totalorder %s168, %s170
    %p174 = scmp.eq.s32.totalorder %s13, 0
    %p175 = por %p173, %p174
    %p176 = scmp.ne.s32.totalorder %s168, %s170
    %p177 = scmp.eq.s32.totalorder %s18, 3
    %p178 = por %p176, %p177
    %p179 = scmp.ne.s32.totalorder %s170, %s171
    %p180 = scmp.eq.s32.totalorder %s18, 0
    %p181 = por %p179, %p180
    %p182 = scmp.ne.s32.totalorder %s170, %s171
    %p183 = scmp.eq.s32.totalorder %s19, 3
    %p184 = por %p182, %p183
    %p186 = scmp.ne.s32.totalorder %s171, %s185
    %p187 = scmp.eq.s32.totalorder %s19, 0
    %p188 = por %p186, %p187
    %s190 = sadd.s32 %s189, 1
    %p193 = scmp.eq.s32.totalorder %s13, 3
    %p194 = scmp.ne.s32.totalorder %s189, %s191
    %p195 = scmp.eq.s32.totalorder %s13, 0
    %p196 = por %p194, %p195
    %p197 = scmp.ne.s32.totalorder %s189, %s191
    %p198 = scmp.eq.s32.totalorder %s18, 3
    %p199 = por %p197, %p198
    %p200 = scmp.ne.s32.totalorder %s191, %s192
    %p201 = scmp.eq.s32.totalorder %s18, 0
    %p202 = por %p200, %p201
    %p203 = scmp.ne.s32.totalorder %s191, %s192
    %p204 = scmp.eq.s32.totalorder %s19, 3
    %p205 = por %p203, %p204
    %p207 = scmp.ne.s32.totalorder %s192, %s206
    %p208 = scmp.eq.s32.totalorder %s19, 0
    %p209 = por %p207, %p208
    %p210 = scmp.le.s32.totalorder 1, %s13
    %p211 = scmp.lt.s32.totalorder %s13, 5
    %p212 = pnand %p210, %p211
    %p213 = pneg %p212
    // Predicated region
    $region9: #{gcn_summarizer_forward.1} parent=5 // pred_check
      _
    $region10: #{gcn_summarizer_forward.1} parent=5 // pred_check_branch
      %215 = sbr.rel (%p212) target = $region12
    $region11: #{gcn_summarizer_forward.1} parent=5 // pred_region
      %s216 = ssub.s32 %s13, 1
      // Predicated region
      $region13: #{gcn_summarizer_forward.1} parent=11 // pred_check
        %p217 = pneg %p46
      $region14: #{gcn_summarizer_forward.1} parent=11 // pred_check_branch
        %219 = sbr.rel (%p217) target = $region16
      $region15: #{gcn_summarizer_forward.1} parent=11 // pred_region
        _
      $region16: #{gcn_summarizer_forward.1} parent=11 // pred_fallthru
        _
      // Predicated region
      $region17: #{gcn_summarizer_forward.1} parent=11 // pred_check
        %p220 = pneg %p67
      $region18: #{gcn_summarizer_forward.1} parent=11 // pred_check_branch
        %222 = sbr.rel (%p220) target = $region20
      $region19: #{gcn_summarizer_forward.1} parent=11 // pred_region
        _
      $region20: #{gcn_summarizer_forward.1} parent=11 // pred_fallthru
        _
      // Predicated region
      $region21: #{gcn_summarizer_forward.1} parent=11 // pred_check
        %p223 = pneg %p118
      $region22: #{gcn_summarizer_forward.1} parent=11 // pred_check_branch
        %225 = sbr.rel (%p223) target = $region24
      $region23: #{gcn_summarizer_forward.1} parent=11 // pred_region
        _
      $region24: #{gcn_summarizer_forward.1} parent=11 // pred_fallthru
        _
      // Predicated region
      $region25: #{gcn_summarizer_forward.1} parent=11 // pred_check
        %p226 = pneg %p139
      $region26: #{gcn_summarizer_forward.1} parent=11 // pred_check_branch
        %228 = sbr.rel (%p226) target = $region28
      $region27: #{gcn_summarizer_forward.1} parent=11 // pred_region
        _
      $region28: #{gcn_summarizer_forward.1} parent=11 // pred_fallthru
        _
      // Predicated region
      $region29: #{gcn_summarizer_forward.1} parent=11 // pred_check
        %p229 = pneg %p160
      $region30: #{gcn_summarizer_forward.1} parent=11 // pred_check_branch
        %231 = sbr.rel (%p229) target = $region32
      $region31: #{gcn_summarizer_forward.1} parent=11 // pred_region
        _
      $region32: #{gcn_summarizer_forward.1} parent=11 // pred_fallthru
        _
      // Predicated region
      $region33: #{gcn_summarizer_forward.1} parent=11 // pred_check
        %p232 = pneg %p181
      $region34: #{gcn_summarizer_forward.1} parent=11 // pred_check_branch
        %234 = sbr.rel (%p232) target = $region36
      $region35: #{gcn_summarizer_forward.1} parent=11 // pred_region
        _
      $region36: #{gcn_summarizer_forward.1} parent=11 // pred_fallthru
        _
    $region12: #{gcn_summarizer_forward.1} parent=5 // pred_fallthru
      _
    %p235 = scmp.lt.s32.totalorder %s13, 4
    // Predicated region
    $region37: #{gcn_summarizer_forward.1} parent=5 // pred_check
      %p236 = pneg %p235
    $region38: #{gcn_summarizer_forward.1} parent=5 // pred_check_branch
      %238 = sbr.rel (%p236) target = $region40
    $region39: #{gcn_summarizer_forward.1} parent=5 // pred_region
      // Predicated region
      $region41: #{gcn_summarizer_forward.1} parent=39 // pred_check
        %p239 = pneg %p91
      $region42: #{gcn_summarizer_forward.1} parent=39 // pred_check_branch
        %241 = sbr.rel (%p239) target = $region44
      $region43: #{gcn_summarizer_forward.1} parent=39 // pred_region
        %p242 = scmp.eq.s32.totalorder %s20, 3
        %s243 = scalar_select %p242, %s21, 0
        %s244 = smul.u32 2, %s243
        %p245 = scmp.lt.s32.totalorder %s244, 1
        %s246 = scalar_select %p245, %s244, 1
        %s247 = smul.addr %s246, 8
        %s248 = scalar_lea.vmem %s2, %s247
        %p249 = scmp.eq.s32.totalorder %s20, 3
        %s250 = scalar_select %p249, %s21, 0
        %s251 = smul.u32 2, %s250
      $region44: #{gcn_summarizer_forward.1} parent=39 // pred_fallthru
        _
    $region40: #{gcn_summarizer_forward.1} parent=5 // pred_fallthru
      _
    %p252 = scmp.le.s32.totalorder 1, %s13
    %p253 = scmp.lt.s32.totalorder %s13, 5
    %p254 = pnand %p252, %p253
    %p255 = pneg %p254
    // Predicated region
    $region45: #{gcn_summarizer_forward.1} parent=5 // pred_check
      _
    $region46: #{gcn_summarizer_forward.1} parent=5 // pred_check_branch
      %257 = sbr.rel (%p254) target = $region48
    $region47: #{gcn_summarizer_forward.1} parent=5 // pred_region
      %s258 = ssub.s32 %s13, 1
      %p259 = pneg %p46
      %p260 = pneg %p43
      %p261 = pneg %p67
      %p262 = pneg %p64
      %p263 = scmp.eq.s32.totalorder %s22, 3
      %s264 = scalar_select %p263, %s23, 0
      %s265 = smul.u32 2, %s264
      %p266 = scmp.lt.s32.totalorder %s265, 1
      %s267 = scalar_select %p266, %s265, 1
      %s268 = smul.addr %s267, 8
      %s269 = scalar_lea.vmem %s2, %s268
      %p270 = pneg %p97
      %p271 = pneg %p94
      %p272 = pneg %p118
      %p273 = pneg %p115
      %p274 = pneg %p139
      %p275 = pneg %p136
      %p276 = pneg %p160
      %p277 = pneg %p157
      %p278 = pneg %p181
      %p279 = pneg %p178
      %p280 = pneg %p202
      %p281 = pneg %p199
      %p282 = scmp.eq.s32.totalorder %s22, 3
      %s283 = scalar_select %p282, %s23, 0
      %s284 = smul.u32 2, %s283
      %p285 = scmp.lt.s32.totalorder %s284, 1
      %s286 = scalar_select %p285, %s284, 1
      %s287 = smul.addr %s286, 8
      %s288 = scalar_lea.vmem %s2, %s287
      %p289 = scmp.eq.s32.totalorder %s22, 3
      %s290 = scalar_select %p289, %s23, 0
      %s291 = smul.u32 2, %s290
      %s293 = smul.u32 %s23, 256
      %p294 = scmp.eq.s32.totalorder %s22, 0
      %p295 = scmp.eq.s32.totalorder %s23, 0
      %p296 = pnand %p294, %p295
      %p297 = pneg %p296
      // Predicated region
      $region49: #{gcn_summarizer_forward.1} parent=47 // pred_check
        _
      $region50: #{gcn_summarizer_forward.1} parent=47 // pred_check_branch
        %299 = sbr.rel (%p296) target = $region52
      $region51: #{gcn_summarizer_forward.1} parent=47 // pred_region
        %v300 = vld [vmem:[%s1] sm:$0xf]
        %v301 = vld [vmem:[%s1 + $0x4] sm:$0xf]
        %v302 = vld [vmem:[%s1 + $0x8] sm:$0xf]
        %v303 = vld [vmem:[%s1 + $0xc] sm:$0xf]
        %v304 = vld [vmem:[%s1 + $0x10] sm:$0xf]
        %v305 = vld [vmem:[%s1 + $0x14] sm:$0xf]
        %v306 = vld [vmem:[%s1 + $0x18] sm:$0xf]
        %v307 = vld [vmem:[%s1 + $0x1c] sm:$0xf]
        %v308 = vld [vmem:[%s1 + $0x20] sm:$0xf]
        %v309 = vld [vmem:[%s1 + $0x24] sm:$0xf]
        %v310 = vld [vmem:[%s1 + $0x28] sm:$0xf]
        %v311 = vld [vmem:[%s1 + $0x2c] sm:$0xf]
        %v312 = vld [vmem:[%s1 + $0x30] sm:$0xf]
        %v313 = vld [vmem:[%s1 + $0x34] sm:$0xf]
        %v314 = vld [vmem:[%s1 + $0x38] sm:$0xf]
        %v315 = vld [vmem:[%s1 + $0x3c] sm:$0xf]
        %v316 = vld [vmem:[%s1 + $0x40] sm:$0xf]
        %v317 = vld [vmem:[%s1 + $0x44] sm:$0xf]
        %v318 = vld [vmem:[%s1 + $0x48] sm:$0xf]
        %v319 = vld [vmem:[%s1 + $0x4c] sm:$0xf]
        %v320 = vld [vmem:[%s1 + $0x50] sm:$0xf]
        %v321 = vld [vmem:[%s1 + $0x54] sm:$0xf]
        %v322 = vld [vmem:[%s1 + $0x58] sm:$0xf]
        %v323 = vld [vmem:[%s1 + $0x5c] sm:$0xf]
        %v324 = vld [vmem:[%s1 + $0x60] sm:$0xf]
        %v325 = vld [vmem:[%s1 + $0x64] sm:$0xf]
        %v326 = vld [vmem:[%s1 + $0x68] sm:$0xf]
        %v327 = vld [vmem:[%s1 + $0x6c] sm:$0xf]
        %v328 = vld [vmem:[%s1 + $0x70] sm:$0xf]
        %v329 = vld [vmem:[%s1 + $0x74] sm:$0xf]
        %v330 = vld [vmem:[%s1 + $0x78] sm:$0xf]
        %v331 = vld [vmem:[%s1 + $0x7c] sm:$0xf]
        %v364 = vunpack.c.l.b16 %v300
        %v365 = vunpack.c.l.b16 %v301
        %v366 = vunpack.c.l.b16 %v302
        %v367 = vunpack.c.l.b16 %v303
        %v368 = vunpack.c.l.b16 %v304
        %v369 = vunpack.c.l.b16 %v305
        %v370 = vunpack.c.l.b16 %v306
        %v371 = vunpack.c.l.b16 %v307
        %v372 = vunpack.c.l.b16 %v308
        %v373 = vunpack.c.l.b16 %v309
        %v374 = vunpack.c.l.b16 %v310
        %v375 = vunpack.c.l.b16 %v311
        %v376 = vunpack.c.l.b16 %v312
        %v377 = vunpack.c.l.b16 %v313
        %v378 = vunpack.c.l.b16 %v314
        %v379 = vunpack.c.l.b16 %v315
        %v380 = vunpack.c.l.b16 %v316
        %v381 = vunpack.c.l.b16 %v317
        %v382 = vunpack.c.l.b16 %v318
        %v383 = vunpack.c.l.b16 %v319
        %v384 = vunpack.c.l.b16 %v320
        %v385 = vunpack.c.l.b16 %v321
        %v386 = vunpack.c.l.b16 %v322
        %v387 = vunpack.c.l.b16 %v323
        %v388 = vunpack.c.l.b16 %v324
        %v389 = vunpack.c.l.b16 %v325
        %v390 = vunpack.c.l.b16 %v326
        %v391 = vunpack.c.l.b16 %v327
        %v392 = vunpack.c.l.b16 %v328
        %v393 = vunpack.c.l.b16 %v329
        %v394 = vunpack.c.l.b16 %v330
        %v395 = vunpack.c.l.b16 %v331
        %v396 = vpack.c.b16 %v365, %v364
        %v397 = vpack.c.b16 %v367, %v366
        %v398 = vpack.c.b16 %v369, %v368
        %v399 = vpack.c.b16 %v371, %v370
        %v400 = vpack.c.b16 %v373, %v372
        %v401 = vpack.c.b16 %v375, %v374
        %v402 = vpack.c.b16 %v377, %v376
        %v403 = vpack.c.b16 %v379, %v378
        %v404 = vpack.c.b16 %v381, %v380
        %v405 = vpack.c.b16 %v383, %v382
        %v406 = vpack.c.b16 %v385, %v384
        %v407 = vpack.c.b16 %v387, %v386
        %v408 = vpack.c.b16 %v389, %v388
        %v409 = vpack.c.b16 %v391, %v390
        %v410 = vpack.c.b16 %v393, %v392
        %v411 = vpack.c.b16 %v395, %v394
        %428 = vst [vmem:[#allocation2] sm:$0xff] %v396
        %429 = vst [vmem:[#allocation2 + $0x8] sm:$0xff] %v397
        %430 = vst [vmem:[#allocation2 + $0x10] sm:$0xff] %v398
        %431 = vst [vmem:[#allocation2 + $0x18] sm:$0xff] %v399
        %432 = vst [vmem:[#allocation2 + $0x20] sm:$0xff] %v400
        %433 = vst [vmem:[#allocation2 + $0x28] sm:$0xff] %v401
        %434 = vst [vmem:[#allocation2 + $0x30] sm:$0xff] %v402
        %435 = vst [vmem:[#allocation2 + $0x38] sm:$0xff] %v403
        %436 = vst [vmem:[#allocation2 + $0x40] sm:$0xff] %v404
        %437 = vst [vmem:[#allocation2 + $0x48] sm:$0xff] %v405
        %438 = vst [vmem:[#allocation2 + $0x50] sm:$0xff] %v406
        %439 = vst [vmem:[#allocation2 + $0x58] sm:$0xff] %v407
        %440 = vst [vmem:[#allocation2 + $0x60] sm:$0xff] %v408
        %441 = vst [vmem:[#allocation2 + $0x68] sm:$0xff] %v409
        %442 = vst [vmem:[#allocation2 + $0x70] sm:$0xff] %v410
        %443 = vst [vmem:[#allocation2 + $0x78] sm:$0xff] %v411
        %444 = vst [vmem:[#allocation3] sm:$0xff] 0.0
      $region52: #{gcn_summarizer_forward.1} parent=47 // pred_fallthru
        _
      %s445 = sshra.s32 %s293, 3
      %s446 = sand.u32 %s293, 7
      %s447 = smul.u32 %s445, 2
      %s448 = smul.addr %s447, 4
      %s449 = scalar_lea.vmem %s0, %s448
      %v450 = vld [vmem:[%s449] sm:$0xff]
      %v451 = vld [vmem:[%s449 + $0x8] sm:$0xff]
      %v452 = vld [vmem:[%s449 + $0x10] sm:$0xff]
      %v453 = vld [vmem:[%s449 + $0x18] sm:$0xff]
      %v454 = vld [vmem:[%s449 + $0x20] sm:$0xff]
      %v455 = vld [vmem:[%s449 + $0x28] sm:$0xff]
      %v456 = vld [vmem:[%s449 + $0x30] sm:$0xff]
      %v457 = vld [vmem:[%s449 + $0x38] sm:$0xff]
      %v458 = vld [vmem:[%s449 + $0x40] sm:$0xff]
      %v459 = vld [vmem:[%s449 + $0x48] sm:$0xff]
      %v460 = vld [vmem:[%s449 + $0x50] sm:$0xff]
      %v461 = vld [vmem:[%s449 + $0x58] sm:$0xff]
      %v462 = vld [vmem:[%s449 + $0x60] sm:$0xff]
      %v463 = vld [vmem:[%s449 + $0x68] sm:$0xff]
      %v464 = vld [vmem:[%s449 + $0x70] sm:$0xff]
      %v465 = vld [vmem:[%s449 + $0x78] sm:$0xff]
      %v466 = vld [vmem:[%s449 + $0x80] sm:$0xff]
      %v467 = vld [vmem:[%s449 + $0x88] sm:$0xff]
      %v468 = vld [vmem:[%s449 + $0x90] sm:$0xff]
      %v469 = vld [vmem:[%s449 + $0x98] sm:$0xff]
      %v470 = vld [vmem:[%s449 + $0xa0] sm:$0xff]
      %v471 = vld [vmem:[%s449 + $0xa8] sm:$0xff]
      %v472 = vld [vmem:[%s449 + $0xb0] sm:$0xff]
      %v473 = vld [vmem:[%s449 + $0xb8] sm:$0xff]
      %v474 = vld [vmem:[%s449 + $0xc0] sm:$0xff]
      %v475 = vld [vmem:[%s449 + $0xc8] sm:$0xff]
      %v476 = vld [vmem:[%s449 + $0xd0] sm:$0xff]
      %v477 = vld [vmem:[%s449 + $0xd8] sm:$0xff]
      %v478 = vld [vmem:[%s449 + $0xe0] sm:$0xff]
      %v479 = vld [vmem:[%s449 + $0xe8] sm:$0xff]
      %v480 = vld [vmem:[%s449 + $0xf0] sm:$0xff]
      %v481 = vld [vmem:[%s449 + $0xf8] sm:$0xff]
      %p482 = scmp.lt.s32.totalorder %s22, 0
      %s483 = ssub.s32 0, %s22
      %s484 = scalar_select %p482, %s483, %s22
      %s485 = sand.u32 %s484, 1
      %s486 = ssub.s32 0, %s485
      %s487 = scalar_select %p482, %s486, %s485
      %p488 = scmp.ne.s32.totalorder %s487, 0
      %p489 = scmp.lt.s32.totalorder %s487, 0
      %p490 = pnand %p489, %p488
      %p491 = pneg %p490
      %s492 = sadd.s32 %s487, 2
      %s493 = scalar_select %p491, %s492, %s487
      %s494 = smul.u32 %s493, 16
      %s495 = smul.addr %s494, 8
      %s496 = scalar_lea.vmem [#allocation2], %s495
      %v497 = vld [vmem:[%s496] sm:$0xff]
      %v498 = vld [vmem:[%s496 + $0x8] sm:$0xff]
      %v499 = vld [vmem:[%s496 + $0x10] sm:$0xff]
      %v500 = vld [vmem:[%s496 + $0x18] sm:$0xff]
      %v501 = vld [vmem:[%s496 + $0x20] sm:$0xff]
      %v502 = vld [vmem:[%s496 + $0x28] sm:$0xff]
      %v503 = vld [vmem:[%s496 + $0x30] sm:$0xff]
      %v504 = vld [vmem:[%s496 + $0x38] sm:$0xff]
      %v505 = vld [vmem:[%s496 + $0x40] sm:$0xff]
      %v506 = vld [vmem:[%s496 + $0x48] sm:$0xff]
      %v507 = vld [vmem:[%s496 + $0x50] sm:$0xff]
      %v508 = vld [vmem:[%s496 + $0x58] sm:$0xff]
      %v509 = vld [vmem:[%s496 + $0x60] sm:$0xff]
      %v510 = vld [vmem:[%s496 + $0x68] sm:$0xff]
      %v511 = vld [vmem:[%s496 + $0x70] sm:$0xff]
      %v512 = vld [vmem:[%s496 + $0x78] sm:$0xff]
      %s513 = scalar_lea.vmem %s4, %s22
      %v514 = vld [vmem:[%s513] sm:$0x1]
      %v516 = vlaneseq
      %v517 = vshrl.u32 %v516, 7
      %v518 = vsub.s32 0, %v517
      %v519 = vrot.slane %v514, %v518
      %v553 = vunpack.c.l.b16 %v450
      %v554 = vunpack.c.h.b16 %v450
      %v555 = vunpack.c.l.b16 %v451
      %v556 = vunpack.c.h.b16 %v451
      %v557 = vunpack.c.l.b16 %v452
      %v558 = vunpack.c.h.b16 %v452
      %v559 = vunpack.c.l.b16 %v453
      %v560 = vunpack.c.h.b16 %v453
      %v561 = vunpack.c.l.b16 %v454
      %v562 = vunpack.c.h.b16 %v454
      %v563 = vunpack.c.l.b16 %v455
      %v564 = vunpack.c.h.b16 %v455
      %v565 = vunpack.c.l.b16 %v456
      %v566 = vunpack.c.h.b16 %v456
      %v567 = vunpack.c.l.b16 %v457
      %v568 = vunpack.c.h.b16 %v457
      %v569 = vunpack.c.l.b16 %v458
      %v570 = vunpack.c.h.b16 %v458
      %v571 = vunpack.c.l.b16 %v459
      %v572 = vunpack.c.h.b16 %v459
      %v573 = vunpack.c.l.b16 %v460
      %v574 = vunpack.c.h.b16 %v460
      %v575 = vunpack.c.l.b16 %v461
      %v576 = vunpack.c.h.b16 %v461
      %v577 = vunpack.c.l.b16 %v462
      %v578 = vunpack.c.h.b16 %v462
      %v579 = vunpack.c.l.b16 %v463
      %v580 = vunpack.c.h.b16 %v463
      %v581 = vunpack.c.l.b16 %v464
      %v582 = vunpack.c.h.b16 %v464
      %v583 = vunpack.c.l.b16 %v465
      %v584 = vunpack.c.h.b16 %v465
      %v585 = vunpack.c.l.b16 %v466
      %v586 = vunpack.c.h.b16 %v466
      %v587 = vunpack.c.l.b16 %v467
      %v588 = vunpack.c.h.b16 %v467
      %v589 = vunpack.c.l.b16 %v468
      %v590 = vunpack.c.h.b16 %v468
      %v591 = vunpack.c.l.b16 %v469
      %v592 = vunpack.c.h.b16 %v469
      %v593 = vunpack.c.l.b16 %v470
      %v594 = vunpack.c.h.b16 %v470
      %v595 = vunpack.c.l.b16 %v471
      %v596 = vunpack.c.h.b16 %v471
      %v597 = vunpack.c.l.b16 %v472
      %v598 = vunpack.c.h.b16 %v472
      %v599 = vunpack.c.l.b16 %v473
      %v600 = vunpack.c.h.b16 %v473
      %v601 = vunpack.c.l.b16 %v474
      %v602 = vunpack.c.h.b16 %v474
      %v603 = vunpack.c.l.b16 %v475
      %v604 = vunpack.c.h.b16 %v475
      %v605 = vunpack.c.l.b16 %v476
      %v606 = vunpack.c.h.b16 %v476
      %v607 = vunpack.c.l.b16 %v477
      %v608 = vunpack.c.h.b16 %v477
      %v609 = vunpack.c.l.b16 %v478
      %v610 = vunpack.c.h.b16 %v478
      %v611 = vunpack.c.l.b16 %v479
      %v612 = vunpack.c.h.b16 %v479
      %v613 = vunpack.c.l.b16 %v480
      %v614 = vunpack.c.h.b16 %v480
      %v615 = vunpack.c.l.b16 %v481
      %v616 = vunpack.c.h.b16 %v481
      %v617 = vpack.c.b16 %v555, %v553
      %v618 = vpack.c.b16 %v556, %v554
      %v619 = vpack.c.b16 %v559, %v557
      %v620 = vpack.c.b16 %v560, %v558
      %v621 = vpack.c.b16 %v563, %v561
      %v622 = vpack.c.b16 %v564, %v562
      %v623 = vpack.c.b16 %v567, %v565
      %v624 = vpack.c.b16 %v568, %v566
      %v625 = vpack.c.b16 %v571, %v569
      %v626 = vpack.c.b16 %v572, %v570
      %v627 = vpack.c.b16 %v575, %v573
      %v628 = vpack.c.b16 %v576, %v574
      %v629 = vpack.c.b16 %v579, %v577
      %v630 = vpack.c.b16 %v580, %v578
      %v631 = vpack.c.b16 %v583, %v581
      %v632 = vpack.c.b16 %v584, %v582
      %v633 = vpack.c.b16 %v587, %v585
      %v634 = vpack.c.b16 %v588, %v586
      %v635 = vpack.c.b16 %v591, %v589
      %v636 = vpack.c.b16 %v592, %v590
      %v637 = vpack.c.b16 %v595, %v593
      %v638 = vpack.c.b16 %v596, %v594
      %v639 = vpack.c.b16 %v599, %v597
      %v640 = vpack.c.b16 %v600, %v598
      %v641 = vpack.c.b16 %v603, %v601
      %v642 = vpack.c.b16 %v604, %v602
      %v643 = vpack.c.b16 %v607, %v605
      %v644 = vpack.c.b16 %v608, %v606
      %v645 = vpack.c.b16 %v611, %v609
      %v646 = vpack.c.b16 %v612, %v610
      %v647 = vpack.c.b16 %v615, %v613
      %v648 = vpack.c.b16 %v616, %v614
      %681 = vmatprep.subr.bf16.mxu0 0
      %682 = vmatpush1.bf16.msra.mxu0 %v497
      %683 = vmatprep.subr.bf16.mxu0 0
      %684 = vmatpush1.bf16.msra.mxu0 %v498
      %685 = vmatprep.subr.bf16.mxu0 0
      %686 = vmatpush1.bf16.msra.mxu0 %v499
      %687 = vmatprep.subr.bf16.mxu0 0
      %688 = vmatpush1.bf16.msra.mxu0 %v500
      %689 = vmatprep.subr.bf16.mxu0 0
      %690 = vmatpush1.bf16.msra.mxu0 %v501
      %691 = vmatprep.subr.bf16.mxu0 0
      %692 = vmatpush1.bf16.msra.mxu0 %v502
      %693 = vmatprep.subr.bf16.mxu0 0
      %694 = vmatpush1.bf16.msra.mxu0 %v503
      %695 = vmatprep.subr.bf16.mxu0 0
      %696 = vmatpush1.bf16.msra.mxu0 %v504
      %697 = vmatprep.subr.bf16.mxu0 0
      %698 = vmatpush1.bf16.msra.mxu0 %v505
      %699 = vmatprep.subr.bf16.mxu0 0
      %700 = vmatpush1.bf16.msra.mxu0 %v506
      %701 = vmatprep.subr.bf16.mxu0 0
      %702 = vmatpush1.bf16.msra.mxu0 %v507
      %703 = vmatprep.subr.bf16.mxu0 0
      %704 = vmatpush1.bf16.msra.mxu0 %v508
      %705 = vmatprep.subr.bf16.mxu0 0
      %706 = vmatpush1.bf16.msra.mxu0 %v509
      %707 = vmatprep.subr.bf16.mxu0 0
      %708 = vmatpush1.bf16.msra.mxu0 %v510
      %709 = vmatprep.subr.bf16.mxu0 0
      %710 = vmatpush1.bf16.msra.mxu0 %v511
      %711 = vmatprep.subr.bf16.mxu0 0
      %712 = vmatpush1.bf16.msra.mxu0 %v512
      %713 = vmatprep.mubr.bf16.mxu0 %v618
      %714 = vmatmul.mubr.bf16.gmra.mrb[0].mxu0 %v617
      %v715 = vpop.f32.mrb[0].mxu0
      %v716 = vadd.f32 %v519, %v715
      %v717 = vpop.f32.mrb[0].mxu0
      %v718 = vpop.f32.mrb[0].mxu0
      %v719 = vadd.f32 %v519, %v718
      %v720 = vpop.f32.mrb[0].mxu0
      %721 = vmatprep.mubr.bf16.mxu0 %v620
      %722 = vmatmul.mubr.bf16.gmra.mrb[0].mxu0 %v619
      %v723 = vpop.f32.mrb[0].mxu0
      %v724 = vadd.f32 %v519, %v723
      %v725 = vpop.f32.mrb[0].mxu0
      %v726 = vpop.f32.mrb[0].mxu0
      %v727 = vadd.f32 %v519, %v726
      %v728 = vpop.f32.mrb[0].mxu0
      %729 = vmatprep.mubr.bf16.mxu0 %v622
      %730 = vmatmul.mubr.bf16.gmra.mrb[0].mxu0 %v621
      %v731 = vpop.f32.mrb[0].mxu0
      %v732 = vadd.f32 %v519, %v731
      %v733 = vpop.f32.mrb[0].mxu0
      %v734 = vpop.f32.mrb[0].mxu0
      %v735 = vadd.f32 %v519, %v734
      %v736 = vpop.f32.mrb[0].mxu0
      %737 = vmatprep.mubr.bf16.mxu0 %v624
      %738 = vmatmul.mubr.bf16.gmra.mrb[0].mxu0 %v623
      %v739 = vpop.f32.mrb[0].mxu0
      %v740 = vadd.f32 %v519, %v739
      %v741 = vpop.f32.mrb[0].mxu0
      %v742 = vpop.f32.mrb[0].mxu0
      %v743 = vadd.f32 %v519, %v742
      %v744 = vpop.f32.mrb[0].mxu0
      %745 = vmatprep.mubr.bf16.mxu0 %v626
      %746 = vmatmul.mubr.bf16.gmra.mrb[0].mxu0 %v625
      %v747 = vpop.f32.mrb[0].mxu0
      %v748 = vadd.f32 %v519, %v747
      %v749 = vpop.f32.mrb[0].mxu0
      %v750 = vpop.f32.mrb[0].mxu0
      %v751 = vadd.f32 %v519, %v750
      %v752 = vpop.f32.mrb[0].mxu0
      %753 = vmatprep.mubr.bf16.mxu0 %v628
      %754 = vmatmul.mubr.bf16.gmra.mrb[0].mxu0 %v627
      %v755 = vpop.f32.mrb[0].mxu0
      %v756 = vadd.f32 %v519, %v755
      %v757 = vpop.f32.mrb[0].mxu0
      %v758 = vpop.f32.mrb[0].mxu0
      %v759 = vadd.f32 %v519, %v758
      %v760 = vpop.f32.mrb[0].mxu0
      %761 = vmatprep.mubr.bf16.mxu0 %v630
      %762 = vmatmul.mubr.bf16.gmra.mrb[0].mxu0 %v629
      %v763 = vpop.f32.mrb[0].mxu0
      %v764 = vadd.f32 %v519, %v763
      %v765 = vpop.f32.mrb[0].mxu0
      %v766 = vpop.f32.mrb[0].mxu0
      %v767 = vadd.f32 %v519, %v766
      %v768 = vpop.f32.mrb[0].mxu0
      %769 = vmatprep.mubr.bf16.mxu0 %v632
      %770 = vmatmul.mubr.bf16.gmra.mrb[0].mxu0 %v631
      %v771 = vpop.f32.mrb[0].mxu0
      %v772 = vadd.f32 %v519, %v771
      %v773 = vpop.f32.mrb[0].mxu0
      %v774 = vpop.f32.mrb[0].mxu0
      %v775 = vadd.f32 %v519, %v774
      %v776 = vpop.f32.mrb[0].mxu0
      %777 = vmatprep.mubr.bf16.mxu0 %v634
      %778 = vmatmul.mubr.bf16.gmra.mrb[0].mxu0 %v633
      %v779 = vpop.f32.mrb[0].mxu0
      %v780 = vadd.f32 %v519, %v779
      %v781 = vpop.f32.mrb[0].mxu0
      %v782 = vpop.f32.mrb[0].mxu0
      %v783 = vadd.f32 %v519, %v782
      %v784 = vpop.f32.mrb[0].mxu0
      %785 = vmatprep.mubr.bf16.mxu0 %v636
      %786 = vmatmul.mubr.bf16.gmra.mrb[0].mxu0 %v635
      %v787 = vpop.f32.mrb[0].mxu0
      %v788 = vadd.f32 %v519, %v787
      %v789 = vpop.f32.mrb[0].mxu0
      %v790 = vpop.f32.mrb[0].mxu0
      %v791 = vadd.f32 %v519, %v790
      %v792 = vpop.f32.mrb[0].mxu0
      %793 = vmatprep.mubr.bf16.mxu0 %v638
      %794 = vmatmul.mubr.bf16.gmra.mrb[0].mxu0 %v637
      %v795 = vpop.f32.mrb[0].mxu0
      %v796 = vadd.f32 %v519, %v795
      %v797 = vpop.f32.mrb[0].mxu0
      %v798 = vpop.f32.mrb[0].mxu0
      %v799 = vadd.f32 %v519, %v798
      %v800 = vpop.f32.mrb[0].mxu0
      %801 = vmatprep.mubr.bf16.mxu0 %v640
      %802 = vmatmul.mubr.bf16.gmra.mrb[0].mxu0 %v639
      %v803 = vpop.f32.mrb[0].mxu0
      %v804 = vadd.f32 %v519, %v803
      %v805 = vpop.f32.mrb[0].mxu0
      %v806 = vpop.f32.mrb[0].mxu0
      %v807 = vadd.f32 %v519, %v806
      %v808 = vpop.f32.mrb[0].mxu0
      %809 = vmatprep.mubr.bf16.mxu0 %v642
      %810 = vmatmul.mubr.bf16.gmra.mrb[0].mxu0 %v641
      %v811 = vpop.f32.mrb[0].mxu0
      %v812 = vadd.f32 %v519, %v811
      %v813 = vpop.f32.mrb[0].mxu0
      %v814 = vpop.f32.mrb[0].mxu0
      %v815 = vadd.f32 %v519, %v814
      %v816 = vpop.f32.mrb[0].mxu0
      %817 = vmatprep.mubr.bf16.mxu0 %v644
      %818 = vmatmul.mubr.bf16.gmra.mrb[0].mxu0 %v643
      %v819 = vpop.f32.mrb[0].mxu0
      %v820 = vadd.f32 %v519, %v819
      %v821 = vpop.f32.mrb[0].mxu0
      %v822 = vpop.f32.mrb[0].mxu0
      %v823 = vadd.f32 %v519, %v822
      %v824 = vpop.f32.mrb[0].mxu0
      %825 = vmatprep.mubr.bf16.mxu0 %v646
      %826 = vmatmul.mubr.bf16.gmra.mrb[0].mxu0 %v645
      %v827 = vpop.f32.mrb[0].mxu0
      %v828 = vadd.f32 %v519, %v827
      %v829 = vpop.f32.mrb[0].mxu0
      %v830 = vpop.f32.mrb[0].mxu0
      %v831 = vadd.f32 %v519, %v830
      %v832 = vpop.f32.mrb[0].mxu0
      %833 = vmatprep.mubr.bf16.mxu0 %v648
      %834 = vmatmul.mubr.bf16.gmra.mrb[0].mxu0 %v647
      %v835 = vpop.f32.mrb[0].mxu0
      %v836 = vadd.f32 %v519, %v835
      %v837 = vpop.f32.mrb[0].mxu0
      %v838 = vpop.f32.mrb[0].mxu0
      %v839 = vadd.f32 %v519, %v838
      %v840 = vpop.f32.mrb[0].mxu0
      %841 = vdwg.mxu0
      %v842 = vmax.f32 %v716, 0.0
      %v843 = vmax.f32 %v719, 0.0
      %v844 = vmax.f32 %v724, 0.0
      %v845 = vmax.f32 %v727, 0.0
      %v846 = vmax.f32 %v732, 0.0
      %v847 = vmax.f32 %v735, 0.0
      %v848 = vmax.f32 %v740, 0.0
      %v849 = vmax.f32 %v743, 0.0
      %v850 = vmax.f32 %v748, 0.0
      %v851 = vmax.f32 %v751, 0.0
      %v852 = vmax.f32 %v756, 0.0
      %v853 = vmax.f32 %v759, 0.0
      %v854 = vmax.f32 %v764, 0.0
      %v855 = vmax.f32 %v767, 0.0
      %v856 = vmax.f32 %v772, 0.0
      %v857 = vmax.f32 %v775, 0.0
      %v858 = vmax.f32 %v780, 0.0
      %v859 = vmax.f32 %v783, 0.0
      %v860 = vmax.f32 %v788, 0.0
      %v861 = vmax.f32 %v791, 0.0
      %v862 = vmax.f32 %v796, 0.0
      %v863 = vmax.f32 %v799, 0.0
      %v864 = vmax.f32 %v804, 0.0
      %v865 = vmax.f32 %v807, 0.0
      %v866 = vmax.f32 %v812, 0.0
      %v867 = vmax.f32 %v815, 0.0
      %v868 = vmax.f32 %v820, 0.0
      %v869 = vmax.f32 %v823, 0.0
      %v870 = vmax.f32 %v828, 0.0
      %v871 = vmax.f32 %v831, 0.0
      %v872 = vmax.f32 %v836, 0.0
      %v873 = vmax.f32 %v839, 0.0
      %p874 = scmp.lt.s32.totalorder %s22, 3
      // Predicated region
      $region53: #{gcn_summarizer_forward.1} parent=47 // pred_check
        %p875 = pneg %p874
      $region54: #{gcn_summarizer_forward.1} parent=47 // pred_check_branch
        %877 = sbr.rel (%p875) target = $region56
      $region55: #{gcn_summarizer_forward.1} parent=47 // pred_region
        %s878 = sadd.s32 %s22, 1
        %p879 = scmp.lt.s32.totalorder %s878, 3
        %s880 = scalar_select %p879, %s878, 3
        %v881 = vpack.c.bf16 %v843, %v842
        %v882 = vpack.c.bf16 %v845, %v844
        %v883 = vpack.c.bf16 %v847, %v846
        %v884 = vpack.c.bf16 %v849, %v848
        %v885 = vpack.c.bf16 %v851, %v850
        %v886 = vpack.c.bf16 %v853, %v852
        %v887 = vpack.c.bf16 %v855, %v854
        %v888 = vpack.c.bf16 %v857, %v856
        %v889 = vpack.c.bf16 %v859, %v858
        %v890 = vpack.c.bf16 %v861, %v860
        %v891 = vpack.c.bf16 %v863, %v862
        %v892 = vpack.c.bf16 %v865, %v864
        %v893 = vpack.c.bf16 %v867, %v866
        %v894 = vpack.c.bf16 %v869, %v868
        %v895 = vpack.c.bf16 %v871, %v870
        %v896 = vpack.c.bf16 %v873, %v872
        %s897 = smul.u32 %s880, 16
        %s898 = smul.addr %s897, 4
        %s899 = scalar_lea.vmem %s3, %s898
        %v900 = vld [vmem:[%s899] sm:$0xf]
        %v901 = vld [vmem:[%s899 + $0x4] sm:$0xf]
        %v902 = vld [vmem:[%s899 + $0x8] sm:$0xf]
        %v903 = vld [vmem:[%s899 + $0xc] sm:$0xf]
        %v904 = vld [vmem:[%s899 + $0x10] sm:$0xf]
        %v905 = vld [vmem:[%s899 + $0x14] sm:$0xf]
        %v906 = vld [vmem:[%s899 + $0x18] sm:$0xf]
        %v907 = vld [vmem:[%s899 + $0x1c] sm:$0xf]
        %v908 = vld [vmem:[%s899 + $0x20] sm:$0xf]
        %v909 = vld [vmem:[%s899 + $0x24] sm:$0xf]
        %v910 = vld [vmem:[%s899 + $0x28] sm:$0xf]
        %v911 = vld [vmem:[%s899 + $0x2c] sm:$0xf]
        %v912 = vld [vmem:[%s899 + $0x30] sm:$0xf]
        %v913 = vld [vmem:[%s899 + $0x34] sm:$0xf]
        %v914 = vld [vmem:[%s899 + $0x38] sm:$0xf]
        %v915 = vld [vmem:[%s899 + $0x3c] sm:$0xf]
        %v932 = vunpack.c.l.b16 %v900
        %v933 = vunpack.c.l.b16 %v901
        %v934 = vunpack.c.l.b16 %v902
        %v935 = vunpack.c.l.b16 %v903
        %v936 = vunpack.c.l.b16 %v904
        %v937 = vunpack.c.l.b16 %v905
        %v938 = vunpack.c.l.b16 %v906
        %v939 = vunpack.c.l.b16 %v907
        %v940 = vunpack.c.l.b16 %v908
        %v941 = vunpack.c.l.b16 %v909
        %v942 = vunpack.c.l.b16 %v910
        %v943 = vunpack.c.l.b16 %v911
        %v944 = vunpack.c.l.b16 %v912
        %v945 = vunpack.c.l.b16 %v913
        %v946 = vunpack.c.l.b16 %v914
        %v947 = vunpack.c.l.b16 %v915
        %v948 = vpack.c.b16 %v933, %v932
        %v949 = vpack.c.b16 %v935, %v934
        %v950 = vpack.c.b16 %v937, %v936
        %v951 = vpack.c.b16 %v939, %v938
        %v952 = vpack.c.b16 %v941, %v940
        %v953 = vpack.c.b16 %v943, %v942
        %v954 = vpack.c.b16 %v945, %v944
        %v955 = vpack.c.b16 %v947, %v946
        %964 = vmatprep.subr.bf16.mxu0 0
        %965 = vmatpush1.bf16.msra.mxu0 %v948
        %966 = vmatprep.subr.bf16.mxu0 0
        %967 = vmatpush1.bf16.msra.mxu0 %v949
        %968 = vmatprep.subr.bf16.mxu0 0
        %969 = vmatpush1.bf16.msra.mxu0 %v950
        %970 = vmatprep.subr.bf16.mxu0 0
        %971 = vmatpush1.bf16.msra.mxu0 %v951
        %972 = vmatprep.subr.bf16.mxu0 0
        %973 = vmatpush1.bf16.msra.mxu0 %v952
        %974 = vmatprep.subr.bf16.mxu0 0
        %975 = vmatpush1.bf16.msra.mxu0 %v953
        %976 = vmatprep.subr.bf16.mxu0 0
        %977 = vmatpush1.bf16.msra.mxu0 %v954
        %978 = vmatprep.subr.bf16.mxu0 0
        %979 = vmatpush1.bf16.msra.mxu0 %v955
        %980 = vmatprep.subr.bf16.mxu0 0
        %981 = vmatpush1.bf16.msra.mxu0 0
        %982 = vmatprep.subr.bf16.mxu0 0
        %983 = vmatpush1.bf16.msra.mxu0 0
        %984 = vmatprep.subr.bf16.mxu0 0
        %985 = vmatpush1.bf16.msra.mxu0 0
        %986 = vmatprep.subr.bf16.mxu0 0
        %987 = vmatpush1.bf16.msra.mxu0 0
        %988 = vmatprep.subr.bf16.mxu0 0
        %989 = vmatpush1.bf16.msra.mxu0 0
        %990 = vmatprep.subr.bf16.mxu0 0
        %991 = vmatpush1.bf16.msra.mxu0 0
        %992 = vmatprep.subr.bf16.mxu0 0
        %993 = vmatpush1.bf16.msra.mxu0 0
        %994 = vmatprep.subr.bf16.mxu0 0
        %995 = vmatpush1.bf16.msra.mxu0 0
        %996 = vmatprep.mubr.bf16.mxu0 0
        %997 = vmatmul.mubr.bf16.gmra.mrb[0].mxu0 %v881
        %v998 = vpop.f32.mrb[0].mxu0
        %v999 = vadd.f32 0.0, %v998
        %v1000 = vpop.f32.mrb[0].mxu0
        %v1001 = vpop.f32.mrb[0].mxu0
        %v1002 = vadd.f32 0.0, %v1001
        %v1003 = vpop.f32.mrb[0].mxu0
        %1004 = vmatprep.mubr.bf16.mxu0 0
        %1005 = vmatmul.mubr.bf16.gmra.mrb[0].mxu0 %v882
        %v1006 = vpop.f32.mrb[0].mxu0
        %v1007 = vadd.f32 0.0, %v1006
        %v1008 = vpop.f32.mrb[0].mxu0
        %v1009 = vpop.f32.mrb[0].mxu0
        %v1010 = vadd.f32 0.0, %v1009
        %v1011 = vpop.f32.mrb[0].mxu0
        %1012 = vmatprep.mubr.bf16.mxu0 0
        %1013 = vmatmul.mubr.bf16.gmra.mrb[0].mxu0 %v883
        %v1014 = vpop.f32.mrb[0].mxu0
        %v1015 = vadd.f32 0.0, %v1014
        %v1016 = vpop.f32.mrb[0].mxu0
        %v1017 = vpop.f32.mrb[0].mxu0
        %v1018 = vadd.f32 0.0, %v1017
        %v1019 = vpop.f32.mrb[0].mxu0
        %1020 = vmatprep.mubr.bf16.mxu0 0
        %1021 = vmatmul.mubr.bf16.gmra.mrb[0].mxu0 %v884
        %v1022 = vpop.f32.mrb[0].mxu0
        %v1023 = vadd.f32 0.0, %v1022
        %v1024 = vpop.f32.mrb[0].mxu0
        %v1025 = vpop.f32.mrb[0].mxu0
        %v1026 = vadd.f32 0.0, %v1025
        %v1027 = vpop.f32.mrb[0].mxu0
        %1028 = vmatprep.mubr.bf16.mxu0 0
        %1029 = vmatmul.mubr.bf16.gmra.mrb[0].mxu0 %v885
        %v1030 = vpop.f32.mrb[0].mxu0
        %v1031 = vadd.f32 0.0, %v1030
        %v1032 = vpop.f32.mrb[0].mxu0
        %v1033 = vpop.f32.mrb[0].mxu0
        %v1034 = vadd.f32 0.0, %v1033
        %v1035 = vpop.f32.mrb[0].mxu0
        %1036 = vmatprep.mubr.bf16.mxu0 0
        %1037 = vmatmul.mubr.bf16.gmra.mrb[0].mxu0 %v886
        %v1038 = vpop.f32.mrb[0].mxu0
        %v1039 = vadd.f32 0.0, %v1038
        %v1040 = vpop.f32.mrb[0].mxu0
        %v1041 = vpop.f32.mrb[0].mxu0
        %v1042 = vadd.f32 0.0, %v1041
        %v1043 = vpop.f32.mrb[0].mxu0
        %1044 = vmatprep.mubr.bf16.mxu0 0
        %1045 = vmatmul.mubr.bf16.gmra.mrb[0].mxu0 %v887
        %v1046 = vpop.f32.mrb[0].mxu0
        %v1047 = vadd.f32 0.0, %v1046
        %v1048 = vpop.f32.mrb[0].mxu0
        %v1049 = vpop.f32.mrb[0].mxu0
        %v1050 = vadd.f32 0.0, %v1049
        %v1051 = vpop.f32.mrb[0].mxu0
        %1052 = vmatprep.mubr.bf16.mxu0 0
        %1053 = vmatmul.mubr.bf16.gmra.mrb[0].mxu0 %v888
        %v1054 = vpop.f32.mrb[0].mxu0
        %v1055 = vadd.f32 0.0, %v1054
        %v1056 = vpop.f32.mrb[0].mxu0
        %v1057 = vpop.f32.mrb[0].mxu0
        %v1058 = vadd.f32 0.0, %v1057
        %v1059 = vpop.f32.mrb[0].mxu0
        %1060 = vmatprep.mubr.bf16.mxu0 0
        %1061 = vmatmul.mubr.bf16.gmra.mrb[0].mxu0 %v889
        %v1062 = vpop.f32.mrb[0].mxu0
        %v1063 = vadd.f32 0.0, %v1062
        %v1064 = vpop.f32.mrb[0].mxu0
        %v1065 = vpop.f32.mrb[0].mxu0
        %v1066 = vadd.f32 0.0, %v1065
        %v1067 = vpop.f32.mrb[0].mxu0
        %1068 = vmatprep.mubr.bf16.mxu0 0
        %1069 = vmatmul.mubr.bf16.gmra.mrb[0].mxu0 %v890
        %v1070 = vpop.f32.mrb[0].mxu0
        %v1071 = vadd.f32 0.0, %v1070
        %v1072 = vpop.f32.mrb[0].mxu0
        %v1073 = vpop.f32.mrb[0].mxu0
        %v1074 = vadd.f32 0.0, %v1073
        %v1075 = vpop.f32.mrb[0].mxu0
        %1076 = vmatprep.mubr.bf16.mxu0 0
        %1077 = vmatmul.mubr.bf16.gmra.mrb[0].mxu0 %v891
        %v1078 = vpop.f32.mrb[0].mxu0
        %v1079 = vadd.f32 0.0, %v1078
        %v1080 = vpop.f32.mrb[0].mxu0
        %v1081 = vpop.f32.mrb[0].mxu0
        %v1082 = vadd.f32 0.0, %v1081
        %v1083 = vpop.f32.mrb[0].mxu0
        %1084 = vmatprep.mubr.bf16.mxu0 0
        %1085 = vmatmul.mubr.bf16.gmra.mrb[0].mxu0 %v892
        %v1086 = vpop.f32.mrb[0].mxu0
        %v1087 = vadd.f32 0.0, %v1086
        %v1088 = vpop.f32.mrb[0].mxu0
        %v1089 = vpop.f32.mrb[0].mxu0
        %v1090 = vadd.f32 0.0, %v1089
        %v1091 = vpop.f32.mrb[0].mxu0
        %1092 = vmatprep.mubr.bf16.mxu0 0
        %1093 = vmatmul.mubr.bf16.gmra.mrb[0].mxu0 %v893
        %v1094 = vpop.f32.mrb[0].mxu0
        %v1095 = vadd.f32 0.0, %v1094
        %v1096 = vpop.f32.mrb[0].mxu0
        %v1097 = vpop.f32.mrb[0].mxu0
        %v1098 = vadd.f32 0.0, %v1097
        %v1099 = vpop.f32.mrb[0].mxu0
        %1100 = vmatprep.mubr.bf16.mxu0 0
        %1101 = vmatmul.mubr.bf16.gmra.mrb[0].mxu0 %v894
        %v1102 = vpop.f32.mrb[0].mxu0
        %v1103 = vadd.f32 0.0, %v1102
        %v1104 = vpop.f32.mrb[0].mxu0
        %v1105 = vpop.f32.mrb[0].mxu0
        %v1106 = vadd.f32 0.0, %v1105
        %v1107 = vpop.f32.mrb[0].mxu0
        %1108 = vmatprep.mubr.bf16.mxu0 0
        %1109 = vmatmul.mubr.bf16.gmra.mrb[0].mxu0 %v895
        %v1110 = vpop.f32.mrb[0].mxu0
        %v1111 = vadd.f32 0.0, %v1110
        %v1112 = vpop.f32.mrb[0].mxu0
        %v1113 = vpop.f32.mrb[0].mxu0
        %v1114 = vadd.f32 0.0, %v1113
        %v1115 = vpop.f32.mrb[0].mxu0
        %1116 = vmatprep.mubr.bf16.mxu0 0
        %1117 = vmatmul.mubr.bf16.gmra.mrb[0].mxu0 %v896
        %v1118 = vpop.f32.mrb[0].mxu0
        %v1119 = vadd.f32 0.0, %v1118
        %v1120 = vpop.f32.mrb[0].mxu0
        %v1121 = vpop.f32.mrb[0].mxu0
        %v1122 = vadd.f32 0.0, %v1121
        %v1123 = vpop.f32.mrb[0].mxu0
        %1124 = vdwg.mxu0
        %v1125 = vpack.c.bf16 %v1002, %v999
        %v1126 = vpack.c.bf16 %v1010, %v1007
        %v1127 = vpack.c.bf16 %v1018, %v1015
        %v1128 = vpack.c.bf16 %v1026, %v1023
        %v1129 = vpack.c.bf16 %v1034, %v1031
        %v1130 = vpack.c.bf16 %v1042, %v1039
        %v1131 = vpack.c.bf16 %v1050, %v1047
        %v1132 = vpack.c.bf16 %v1058, %v1055
        %v1133 = vpack.c.bf16 %v1066, %v1063
        %v1134 = vpack.c.bf16 %v1074, %v1071
        %v1135 = vpack.c.bf16 %v1082, %v1079
        %v1136 = vpack.c.bf16 %v1090, %v1087
        %v1137 = vpack.c.bf16 %v1098, %v1095
        %v1138 = vpack.c.bf16 %v1106, %v1103
        %v1139 = vpack.c.bf16 %v1114, %v1111
        %v1140 = vpack.c.bf16 %v1122, %v1119
        %p1141 = scmp.lt.s32.totalorder %s878, 0
        %s1142 = ssub.s32 0, %s878
        %s1143 = scalar_select %p1141, %s1142, %s878
        %s1144 = sand.u32 %s1143, 1
        %s1145 = ssub.s32 0, %s1144
        %s1146 = scalar_select %p1141, %s1145, %s1144
        %p1147 = scmp.ne.s32.totalorder %s1146, 0
        %p1148 = scmp.lt.s32.totalorder %s1146, 0
        %p1149 = pnand %p1148, %p1147
        %p1150 = pneg %p1149
        %s1151 = sadd.s32 %s1146, 2
        %s1152 = scalar_select %p1150, %s1151, %s1146
        %s1153 = sshra.s32 %s293, 4
        %s1154 = sand.u32 %s293, 15
        %s1155 = smul.u32 %s1152, 16
        %s1156 = sadd.s32 %s1153, %s1155
        %s1157 = smul.addr %s1156, 8
        %s1158 = scalar_lea.vmem [#allocation2], %s1157
        %1159 = vst [vmem:[%s1158] sm:$0xff] %v1125
        %1160 = vst [vmem:[%s1158 + $0x8] sm:$0xff] %v1126
        %1161 = vst [vmem:[%s1158 + $0x10] sm:$0xff] %v1127
        %1162 = vst [vmem:[%s1158 + $0x18] sm:$0xff] %v1128
        %1163 = vst [vmem:[%s1158 + $0x20] sm:$0xff] %v1129
        %1164 = vst [vmem:[%s1158 + $0x28] sm:$0xff] %v1130
        %1165 = vst [vmem:[%s1158 + $0x30] sm:$0xff] %v1131
        %1166 = vst [vmem:[%s1158 + $0x38] sm:$0xff] %v1132
        %1167 = vst [vmem:[%s1158 + $0x40] sm:$0xff] %v1133
        %1168 = vst [vmem:[%s1158 + $0x48] sm:$0xff] %v1134
        %1169 = vst [vmem:[%s1158 + $0x50] sm:$0xff] %v1135
        %1170 = vst [vmem:[%s1158 + $0x58] sm:$0xff] %v1136
        %1171 = vst [vmem:[%s1158 + $0x60] sm:$0xff] %v1137
        %1172 = vst [vmem:[%s1158 + $0x68] sm:$0xff] %v1138
        %1173 = vst [vmem:[%s1158 + $0x70] sm:$0xff] %v1139
        %1174 = vst [vmem:[%s1158 + $0x78] sm:$0xff] %v1140
      $region56: #{gcn_summarizer_forward.1} parent=47 // pred_fallthru
        _
      %p1175 = scmp.eq.s32.totalorder %s22, 3
      // Predicated region
      $region57: #{gcn_summarizer_forward.1} parent=47 // pred_check
        %p1176 = pneg %p1175
      $region58: #{gcn_summarizer_forward.1} parent=47 // pred_check_branch
        %1178 = sbr.rel (%p1176) target = $region60
      $region59: #{gcn_summarizer_forward.1} parent=47 // pred_region
        %v1179 = vld [vmem:[#allocation3] sm:$0xff]
        %v1180 = vld [vmem:[%s288] sm:$0xff]
        %v1181 = vld [vmem:[%s288 + $0x8] sm:$0xff]
        %1182 = vmatprep.subr.mxu0 0.0
        %1183 = vmatpush1.msra.mxu0 %v842
        %1184 = vmatprep.subr.mxu0 0.0
        %1185 = vmatpush1.msra.mxu0 %v843
        %1186 = vmatprep.subr.mxu0 0.0
        %1187 = vmatpush1.msra.mxu0 %v844
        %1188 = vmatprep.subr.mxu0 0.0
        %1189 = vmatpush1.msra.mxu0 %v845
        %1190 = vmatprep.subr.mxu0 0.0
        %1191 = vmatpush1.msra.mxu0 %v846
        %1192 = vmatprep.subr.mxu0 0.0
        %1193 = vmatpush1.msra.mxu0 %v847
        %1194 = vmatprep.subr.mxu0 0.0
        %1195 = vmatpush1.msra.mxu0 %v848
        %1196 = vmatprep.subr.mxu0 0.0
        %1197 = vmatpush1.msra.mxu0 %v849
        %1198 = vmatprep.subr.mxu0 0.0
        %1199 = vmatpush1.msra.mxu0 %v850
        %1200 = vmatprep.subr.mxu0 0.0
        %1201 = vmatpush1.msra.mxu0 %v851
        %1202 = vmatprep.subr.mxu0 0.0
        %1203 = vmatpush1.msra.mxu0 %v852
        %1204 = vmatprep.subr.mxu0 0.0
        %1205 = vmatpush1.msra.mxu0 %v853
        %1206 = vmatprep.subr.mxu0 0.0
        %1207 = vmatpush1.msra.mxu0 %v854
        %1208 = vmatprep.subr.mxu0 0.0
        %1209 = vmatpush1.msra.mxu0 %v855
        %1210 = vmatprep.subr.mxu0 0.0
        %1211 = vmatpush1.msra.mxu0 %v856
        %1212 = vmatprep.subr.mxu0 0.0
        %1213 = vmatpush1.msra.mxu0 %v857
        %1214 = vmatprep.subr.mxu0 0.0
        %1215 = vmatpush1.msra.mxu0 %v858
        %1216 = vmatprep.subr.mxu0 0.0
        %1217 = vmatpush1.msra.mxu0 %v859
        %1218 = vmatprep.subr.mxu0 0.0
        %1219 = vmatpush1.msra.mxu0 %v860
        %1220 = vmatprep.subr.mxu0 0.0
        %1221 = vmatpush1.msra.mxu0 %v861
        %1222 = vmatprep.subr.mxu0 0.0
        %1223 = vmatpush1.msra.mxu0 %v862
        %1224 = vmatprep.subr.mxu0 0.0
        %1225 = vmatpush1.msra.mxu0 %v863
        %1226 = vmatprep.subr.mxu0 0.0
        %1227 = vmatpush1.msra.mxu0 %v864
        %1228 = vmatprep.subr.mxu0 0.0
        %1229 = vmatpush1.msra.mxu0 %v865
        %1230 = vmatprep.subr.mxu0 0.0
        %1231 = vmatpush1.msra.mxu0 %v866
        %1232 = vmatprep.subr.mxu0 0.0
        %1233 = vmatpush1.msra.mxu0 %v867
        %1234 = vmatprep.subr.mxu0 0.0
        %1235 = vmatpush1.msra.mxu0 %v868
        %1236 = vmatprep.subr.mxu0 0.0
        %1237 = vmatpush1.msra.mxu0 %v869
        %1238 = vmatprep.subr.mxu0 0.0
        %1239 = vmatpush1.msra.mxu0 %v870
        %1240 = vmatprep.subr.mxu0 0.0
        %1241 = vmatpush1.msra.mxu0 %v871
        %1242 = vmatprep.subr.mxu0 0.0
        %1243 = vmatpush1.msra.mxu0 %v872
        %1244 = vmatprep.subr.mxu0 0.0
        %1245 = vmatpush1.msra.mxu0 %v873
        %1246 = vmatprep.mubr.f32.mxu0 %v1181
        %1247 = vmatmul.mubr.f32.gmra.mrb[0].mxu0 %v1180
        %v1248 = vpop.f32.mrb[0].mxu0
        %v1249 = vadd.f32 0.0, %v1248
        %v1250 = vpop.f32.mrb[0].mxu0
        %1251 = vdwg.mxu0
        %v1252 = vadd.f32 %v1179, %v1249
        %1253 = vst [vmem:[#allocation3] sm:$0xff] %v1252
      $region60: #{gcn_summarizer_forward.1} parent=47 // pred_fallthru
        _
      %p1254 = pnand %p1175, %p295
      %p1255 = pneg %p1254
      // Predicated region
      $region61: #{gcn_summarizer_forward.1} parent=47 // pred_check
        _
      $region62: #{gcn_summarizer_forward.1} parent=47 // pred_check_branch
        %1257 = sbr.rel (%p1254) target = $region64
      $region63: #{gcn_summarizer_forward.1} parent=47 // pred_region
        %v1258 = vld [vmem:[#allocation3] sm:$0xff]
        %v1259 = vld [vmem:[%s5] sm:$0xff]
        %v1260 = vld [vmem:[%s5 + $0x8] sm:$0xff]
        %v1261 = vld [vmem:[%s5 + $0x10] sm:$0xff]
        %v1262 = vld [vmem:[%s5 + $0x18] sm:$0xff]
        %v1263 = vld [vmem:[%s5 + $0x20] sm:$0xff]
        %v1264 = vld [vmem:[%s5 + $0x28] sm:$0xff]
        %v1265 = vld [vmem:[%s5 + $0x30] sm:$0xff]
        %v1266 = vld [vmem:[%s5 + $0x38] sm:$0xff]
        %v1267 = vld [vmem:[%s5 + $0x40] sm:$0xff]
        %v1268 = vld [vmem:[%s5 + $0x48] sm:$0xff]
        %v1269 = vld [vmem:[%s5 + $0x50] sm:$0xff]
        %v1270 = vld [vmem:[%s5 + $0x58] sm:$0xff]
        %v1271 = vld [vmem:[%s5 + $0x60] sm:$0xff]
        %v1272 = vld [vmem:[%s5 + $0x68] sm:$0xff]
        %v1273 = vld [vmem:[%s5 + $0x70] sm:$0xff]
        %v1274 = vld [vmem:[%s5 + $0x78] sm:$0xff]
        %v1275 = vld [vmem:[%s6] sm:$0x1]
        %v1277 = vlaneseq
        %v1278 = vshrl.u32 %v1277, 7
        %v1279 = vsub.s32 0, %v1278
        %v1280 = vrot.slane %v1275, %v1279
        %1282 = vmatprep.subr.mxu0 0.0
        %1283 = vmatpush1.msra.mxu0 %v1259
        %1284 = vmatprep.subr.mxu0 0.0
        %1285 = vmatpush1.msra.mxu0 %v1260
        %1286 = vmatprep.subr.mxu0 0.0
        %1287 = vmatpush1.msra.mxu0 %v1261
        %1288 = vmatprep.subr.mxu0 0.0
        %1289 = vmatpush1.msra.mxu0 %v1262
        %1290 = vmatprep.subr.mxu0 0.0
        %1291 = vmatpush1.msra.mxu0 %v1263
        %1292 = vmatprep.subr.mxu0 0.0
        %1293 = vmatpush1.msra.mxu0 %v1264
        %1294 = vmatprep.subr.mxu0 0.0
        %1295 = vmatpush1.msra.mxu0 %v1265
        %1296 = vmatprep.subr.mxu0 0.0
        %1297 = vmatpush1.msra.mxu0 %v1266
        %1298 = vmatprep.subr.mxu0 0.0
        %1299 = vmatpush1.msra.mxu0 %v1267
        %1300 = vmatprep.subr.mxu0 0.0
        %1301 = vmatpush1.msra.mxu0 %v1268
        %1302 = vmatprep.subr.mxu0 0.0
        %1303 = vmatpush1.msra.mxu0 %v1269
        %1304 = vmatprep.subr.mxu0 0.0
        %1305 = vmatpush1.msra.mxu0 %v1270
        %1306 = vmatprep.subr.mxu0 0.0
        %1307 = vmatpush1.msra.mxu0 %v1271
        %1308 = vmatprep.subr.mxu0 0.0
        %1309 = vmatpush1.msra.mxu0 %v1272
        %1310 = vmatprep.subr.mxu0 0.0
        %1311 = vmatpush1.msra.mxu0 %v1273
        %1312 = vmatprep.subr.mxu0 0.0
        %1313 = vmatpush1.msra.mxu0 %v1274
        %1314 = vmatprep.subr.mxu0 0.0
        %1315 = vmatpush1.msra.mxu0 0.0
        %1316 = vmatprep.subr.mxu0 0.0
        %1317 = vmatpush1.msra.mxu0 0.0
        %1318 = vmatprep.subr.mxu0 0.0
        %1319 = vmatpush1.msra.mxu0 0.0
        %1320 = vmatprep.subr.mxu0 0.0
        %1321 = vmatpush1.msra.mxu0 0.0
        %1322 = vmatprep.subr.mxu0 0.0
        %1323 = vmatpush1.msra.mxu0 0.0
        %1324 = vmatprep.subr.mxu0 0.0
        %1325 = vmatpush1.msra.mxu0 0.0
        %1326 = vmatprep.subr.mxu0 0.0
        %1327 = vmatpush1.msra.mxu0 0.0
        %1328 = vmatprep.subr.mxu0 0.0
        %1329 = vmatpush1.msra.mxu0 0.0
        %1330 = vmatprep.subr.mxu0 0.0
        %1331 = vmatpush1.msra.mxu0 0.0
        %1332 = vmatprep.subr.mxu0 0.0
        %1333 = vmatpush1.msra.mxu0 0.0
        %1334 = vmatprep.subr.mxu0 0.0
        %1335 = vmatpush1.msra.mxu0 0.0
        %1336 = vmatprep.subr.mxu0 0.0
        %1337 = vmatpush1.msra.mxu0 0.0
        %1338 = vmatprep.subr.mxu0 0.0
        %1339 = vmatpush1.msra.mxu0 0.0
        %1340 = vmatprep.subr.mxu0 0.0
        %1341 = vmatpush1.msra.mxu0 0.0
        %1342 = vmatprep.subr.mxu0 0.0
        %1343 = vmatpush1.msra.mxu0 0.0
        %1344 = vmatprep.subr.mxu0 0.0
        %1345 = vmatpush1.msra.mxu0 0.0
        %1346 = vmatprep.mubr.f32.mxu0 0.0
        %1347 = vmatmul.mubr.f32.gmra.mrb[0].mxu0 %v1258
        %v1348 = vpop.f32.mrb[0].mxu0
        %v1349 = vadd.f32 %v1280, %v1348
        %v1350 = vpop.f32.mrb[0].mxu0
        %1351 = vdwg.mxu0
        %v1352 = vxor.u32 %v1349, 2147483648
        %v1353 = vmul.f32 %v1352, 1.442695
        %v1354 = vpow.pop %v1353
        %v1355 = vadd.f32 %v1354, 1.0
        %v1356 = vrcp.pop %v1355
        %v1357 = vmul.f32 1.0, %v1356
        %1358 = vst [vmem:[%s7] sm:$0xff] %v1357
      $region64: #{gcn_summarizer_forward.1} parent=47 // pred_fallthru
        _
      // Predicated region
      $region65: #{gcn_summarizer_forward.1} parent=47 // pred_check
        %p1359 = pneg %p199
      $region66: #{gcn_summarizer_forward.1} parent=47 // pred_check_branch
        %1361 = sbr.rel (%p1359) target = $region68
      $region67: #{gcn_summarizer_forward.1} parent=47 // pred_region
        _
      $region68: #{gcn_summarizer_forward.1} parent=47 // pred_fallthru
        _
      // Predicated region
      $region69: #{gcn_summarizer_forward.1} parent=47 // pred_check
        %p1362 = pneg %p199
      $region70: #{gcn_summarizer_forward.1} parent=47 // pred_check_branch
        %1364 = sbr.rel (%p1362) target = $region72
      $region71: #{gcn_summarizer_forward.1} parent=47 // pred_region
        _
      $region72: #{gcn_summarizer_forward.1} parent=47 // pred_fallthru
        _
    $region48: #{gcn_summarizer_forward.1} parent=5 // pred_fallthru
      _
    %p1365 = scmp.le.s32.totalorder 2, %s13
    // Predicated region
    $region73: #{gcn_summarizer_forward.1} parent=5 // pred_check
      %p1366 = pneg %p1365
    $region74: #{gcn_summarizer_forward.1} parent=5 // pred_check_branch
      %1368 = sbr.rel (%p1366) target = $region76
    $region75: #{gcn_summarizer_forward.1} parent=5 // pred_region
      %s1369 = ssub.s32 %s13, 2
    $region76: #{gcn_summarizer_forward.1} parent=5 // pred_fallthru
      _
  $region6: #{gcn_summarizer_forward.1} parent=0 // loop_footer
    %s17 = sadd.s32 1, %s13
  $region7: #{gcn_summarizer_forward.1} parent=0 // loop_footer_branch
    %12 = sbr.rel target = $region3
  $region8: #{gcn_summarizer_forward.1} parent=0 // loop_exit
    _

</llo_original>
